<compile_context>
chip_gen: v7x
topology: tpu7x:2x2x1
jax: 0.10.0
libtpu: 0.0.40
codegen_flags: <defaults>
</compile_context>

<pallas_src>
import jax
import jax.numpy as jnp
from jax.experimental import pallas as pl
from jax.experimental.pallas import tpu as pltpu


# --------------------------------- helpers -----------------------------------------
def _pad_to_multiple(a, multiple, axis):
    pad = (-a.shape[axis]) % multiple
    if pad == 0:
        return a
    widths = [(0, 0)] * a.ndim
    widths[axis] = (0, pad)
    return jnp.pad(a, widths)


def _vmem_budget_bytes():
    """3/4 of physical VMEM (64 MiB on v7x, 128 MiB on v5e/v6e); conservative fallback."""
    try:
        info = pltpu.get_tpu_info()
        cap = getattr(info, "vmem_capacity_bytes", None)
        if cap:
            return int(cap * 3 // 4)
    except Exception:
        pass
    return 48 << 20  # fits v7x's 64 MiB physical VMEM


def _vmem_estimate(bpt, T, widths, in_itemsize):
    """Resident-footprint estimate: params (single-buffered) + double-buffered x/out
    tiles + a few f32 activation slabs + headroom."""
    rows = bpt * T
    params = sum(widths[i] * widths[i + 1] * in_itemsize + widths[i + 1] * 4
                 for i in range(len(widths) - 1))
    x_tile = rows * widths[0] * in_itemsize
    out_tile = bpt * widths[-1] * 4
    act = rows * max(widths) * 4
    return params + 2 * (x_tile + out_tile) + 3 * act + (2 << 20)


def _pick_batches_per_tile(B, T, widths, in_itemsize, target_rows, budget):
    """Batches per grid step.  Valid bpt: divides B, and either bpt == B (single tile,
    block == full array) or bpt % 8 == 0 so both the (bpt*T, Din) input block and the
    (bpt, Dout) output block satisfy the (8, 128) sublane constraint."""
    cands = [b for b in range(1, B + 1)
             if B % b == 0 and (b == B or (b % 8 == 0 and (b * T) % 8 == 0))]
    cands.sort()
    best = cands[0]
    for b in cands:
        if b * T <= max(target_rows, T) and _vmem_estimate(b, T, widths, in_itemsize) <= budget:
            best = b
    return best


# ----------------------------------- kernel ----------------------------------------
def _make_mlp_kernel(num_layers, bpt, T, compute_dtype, precision):
    inv_t = 1.0 / float(T)

    def kernel(x_ref, *refs):
        # refs = (w0, b0, w1, b1, ..., w_{L-1}, b_{L-1}, out)
        w_refs = refs[0:2 * num_layers:2]
        b_refs = refs[1:2 * num_layers:2]
        out_ref = refs[2 * num_layers]

        h = x_ref[...]                                          # (bpt*T, Din_p)
        for i in range(num_layers):                             # L is small; unrolled
            h = jnp.dot(h.astype(compute_dtype), w_refs[i][...],
                        preferred_element_type=jnp.float32,     # f32 accumulation
                        precision=precision)
            h = h + b_refs[i][...]                              # (1, width) f32 bias row
            if i < num_layers - 1:
                h = jnp.maximum(h, 0.0)                         # ReLU (VPU)

        # Temporal mean pool: (bpt*T, Dout_p) -> (bpt, T, Dout_p) -> sum over T
        # (XLU sublane reduce) * 1/T.  No pooling matrix, no extra MXU work, and the
        # (bpt, Dout_p) result is a lane-dense store.
        dout = h.shape[-1]
        pooled = jnp.sum(h.reshape(bpt, T, dout), axis=1) * inv_t
        out_ref[...] = pooled.astype(out_ref.dtype)

        # TODO(synk): masked-mean path (mask is not None) and the optional
        # add_cross_modal_layer branch (Linear+Dropout+ReLU stack) are not
        # implemented; module defaults (mask=None, no cross-modal layer) are used.
    return kernel


# ---------------------------------- wrapper -----------------------------------------
def mlp_transform(x, weights, biases, mask=None, *,
                  compute_dtype=jnp.float32,
                  precision=None,
                  target_rows_per_tile=1024):
    """x: (B, T, Din).  weights[i]: (in_i, out_i).  biases[i]: (out_i,).

    Returns (B, 1, Dout), matching MLPTransform.forward(h, mask=None).
    For production shapes pass compute_dtype=jnp.bfloat16 (bf16 MXU inputs,
    f32 accumulation)."""
    if mask is not None:
        # TODO(synk): masked mean (sum(h*mask)/sum(mask)) not implemented.
        raise NotImplementedError("MLPTransform mask path not implemented in this kernel")

    B, T, Din = x.shape
    num_layers = len(weights)
    Dout = weights[-1].shape[-1]
    lane = 128

    # Fold (B, T) into one lane-dense row axis.
    x_flat = x.reshape(B * T, Din)

    # Zero-pad every feature dim to 128 lanes (zero weight rows/cols + zero bias in
    # the pad region keep the math exact); padded Dout columns are sliced off below.
    x_flat = _pad_to_multiple(x_flat, lane, axis=1).astype(compute_dtype)
    ws, bs = [], []
    for w, b in zip(weights, biases):
        w_p = _pad_to_multiple(_pad_to_multiple(w.astype(compute_dtype), lane, 0), lane, 1)
        b_p = _pad_to_multiple(b.reshape(1, -1).astype(jnp.float32), lane, 1)
        ws.append(w_p)
        bs.append(b_p)
    Din_p = x_flat.shape[1]
    Dout_p = ws[-1].shape[1]
    widths = [Din_p] + [w.shape[1] for w in ws]
    in_itemsize = jnp.dtype(compute_dtype).itemsize

    # Row-tiled grid over whole batches; tile sized against the device VMEM budget.
    budget = _vmem_budget_bytes()
    bpt = _pick_batches_per_tile(B, T, widths, in_itemsize, target_rows_per_tile, budget)
    rows_per_tile = bpt * T
    grid = (B // bpt,)
    vmem_limit = int(min(max(_vmem_estimate(bpt, T, widths, in_itemsize), 8 << 20), budget))

    in_specs = [pl.BlockSpec((rows_per_tile, Din_p), lambda i: (i, 0))]   # pipelined rows
    args = [x_flat]
    for w_p, b_p in zip(ws, bs):
        in_specs.append(pl.BlockSpec(w_p.shape, lambda i: (0, 0)))        # resident weight
        in_specs.append(pl.BlockSpec(b_p.shape, lambda i: (0, 0)))        # resident bias
        args += [w_p, b_p]
    out_specs = pl.BlockSpec((bpt, Dout_p), lambda i: (i, 0))

    out = pl.pallas_call(
        _make_mlp_kernel(num_layers, bpt, T, compute_dtype, precision),
        out_shape=jax.ShapeDtypeStruct((B, Dout_p), jnp.float32),
        grid=grid,
        in_specs=in_specs,
        out_specs=out_specs,
        compiler_params=pltpu.CompilerParams(
            dimension_semantics=("parallel",),     # shard row tiles across TCs (v7x)
            vmem_limit_bytes=vmem_limit),
    )(*args)

    return out[:, :Dout][:, None, :]               # (B, 1, Dout), keepdim like torch.mean


# ---------------------------- pure-JAX reference ------------------------------------
def _ref_forward(x, weights, biases, precision=None):
    h = x
    n = len(weights)
    for i, (w, b) in enumerate(zip(weights, biases)):
        h = jnp.dot(h, w, precision=precision) + b
        if i < n - 1:
            h = jnp.maximum(h, 0.0)
    return jnp.mean(h, axis=1, keepdims=True)


# ------------------------------------ main ------------------------------------------
if __name__ == "__main__":
    # module hyperparameters (small, consistent with __init__ signature)
    B, T = 2, 8                    # batch, temporal length (pooled dim=1)
    input_size = 32
    hidden_size = 64
    num_layers = 3
    output_size = input_size       # output_size=None default -> input_size
    sizes = [input_size] + [hidden_size] * (num_layers - 1) + [output_size]

    key = jax.random.PRNGKey(0)
    keys = jax.random.split(key, 2 * num_layers + 1)

    weights, biases = [], []
    for i in range(num_layers):
        bound = 1.0 / (sizes[i] ** 0.5)          # torch nn.Linear default init scale
        w = jax.random.uniform(keys[2 * i], (sizes[i], sizes[i + 1]),
                               jnp.float32, -bound, bound)
        b = jax.random.uniform(keys[2 * i + 1], (sizes[i + 1],),
                               jnp.float32, -bound, bound)
        weights.append(w)
        biases.append(b)

    x = jax.random.normal(keys[-1], (B, T, input_size), jnp.float32)

    # Strict f32 check: explicit per-call HIGHEST precision on BOTH kernel and
    # reference (no global config mutation).  Production: default precision or
    # compute_dtype=jnp.bfloat16.
    hi = jax.lax.Precision.HIGHEST
    out = jax.block_until_ready(mlp_transform(x, weights, biases, precision=hi))
    ref = jax.block_until_ready(_ref_forward(x, weights, biases, precision=hi))

    assert out.shape == (B, 1, output_size), out.shape
    max_err = float(jnp.max(jnp.abs(out - ref)))
    assert jnp.allclose(out, ref, atol=1e-3, rtol=1e-3), max_err
    print("KERNEL_OK")
</pallas_src>

<mosaic_0001>
module attributes {stable_mosaic.version = 11 : i64} {
  func.func @kernel(%arg0: i32, %arg1: memref<16x128xf32, #tpu.memory_space<vmem>>, %arg2: memref<128x128xf32, #tpu.memory_space<vmem>>, %arg3: memref<1x128xf32, #tpu.memory_space<vmem>>, %arg4: memref<128x128xf32, #tpu.memory_space<vmem>>, %arg5: memref<1x128xf32, #tpu.memory_space<vmem>>, %arg6: memref<128x128xf32, #tpu.memory_space<vmem>>, %arg7: memref<1x128xf32, #tpu.memory_space<vmem>>, %arg8: memref<2x128xf32, #tpu.memory_space<vmem>>) attributes {dimension_semantics = [#tpu.dimension_semantics<parallel>], iteration_bounds = array<i64: 1>, scalar_prefetch = 0 : i64, scratch_operands = 0 : i64, tpu.core_type = #tpu.core_type<tc>, window_params = [{transform_indices = @transform_0, window_bounds = array<i64: 16, 128>}, {pipeline_mode = #tpu.pipeline_mode<synchronous>, transform_indices = @transform_1, window_bounds = array<i64: 128, 128>}, {pipeline_mode = #tpu.pipeline_mode<synchronous>, transform_indices = @transform_2, window_bounds = array<i64: 1, 128>}, {pipeline_mode = #tpu.pipeline_mode<synchronous>, transform_indices = @transform_3, window_bounds = array<i64: 128, 128>}, {pipeline_mode = #tpu.pipeline_mode<synchronous>, transform_indices = @transform_4, window_bounds = array<i64: 1, 128>}, {pipeline_mode = #tpu.pipeline_mode<synchronous>, transform_indices = @transform_5, window_bounds = array<i64: 128, 128>}, {pipeline_mode = #tpu.pipeline_mode<synchronous>, transform_indices = @transform_6, window_bounds = array<i64: 1, 128>}, {transform_indices = @transform_7, window_bounds = array<i64: 2, 128>}]} {
    %c0 = arith.constant 0 : index
    %c0_0 = arith.constant 0 : index
    %0 = vector.load %arg1[%c0, %c0_0] : memref<16x128xf32, #tpu.memory_space<vmem>>, vector<16x128xf32>
    %c0_1 = arith.constant 0 : index
    %c0_2 = arith.constant 0 : index
    %1 = vector.load %arg2[%c0_1, %c0_2] : memref<128x128xf32, #tpu.memory_space<vmem>>, vector<128x128xf32>
    %cst = arith.constant dense<0.000000e+00> : vector<16x128xf32>
    %2 = tpu.matmul %0, %1, %cst {dimension_numbers = #tpu.dot_dimension_numbers<[1], [0], [0], [1], [0, 0, 1, 1], [], []>, precision = #tpu.contract_precision<fp32>} : vector<16x128xf32>, vector<128x128xf32>, vector<16x128xf32> -> vector<16x128xf32>
    %c0_3 = arith.constant 0 : index
    %c0_4 = arith.constant 0 : index
    %3 = vector.load %arg3[%c0_3, %c0_4] : memref<1x128xf32, #tpu.memory_space<vmem>>, vector<1x128xf32>
    %4 = vector.broadcast %3 : vector<1x128xf32> to vector<16x128xf32>
    %5 = arith.addf %2, %4 : vector<16x128xf32>
    %cst_5 = arith.constant 0.000000e+00 : f32
    %6 = vector.broadcast %cst_5 : f32 to vector<16x128xf32>
    %7 = arith.maximumf %5, %6 : vector<16x128xf32>
    %c0_6 = arith.constant 0 : index
    %c0_7 = arith.constant 0 : index
    %8 = vector.load %arg4[%c0_6, %c0_7] : memref<128x128xf32, #tpu.memory_space<vmem>>, vector<128x128xf32>
    %cst_8 = arith.constant dense<0.000000e+00> : vector<16x128xf32>
    %9 = tpu.matmul %7, %8, %cst_8 {dimension_numbers = #tpu.dot_dimension_numbers<[1], [0], [0], [1], [0, 0, 1, 1], [], []>, precision = #tpu.contract_precision<fp32>} : vector<16x128xf32>, vector<128x128xf32>, vector<16x128xf32> -> vector<16x128xf32>
    %c0_9 = arith.constant 0 : index
    %c0_10 = arith.constant 0 : index
    %10 = vector.load %arg5[%c0_9, %c0_10] : memref<1x128xf32, #tpu.memory_space<vmem>>, vector<1x128xf32>
    %11 = vector.broadcast %10 : vector<1x128xf32> to vector<16x128xf32>
    %12 = arith.addf %9, %11 : vector<16x128xf32>
    %cst_11 = arith.constant 0.000000e+00 : f32
    %13 = vector.broadcast %cst_11 : f32 to vector<16x128xf32>
    %14 = arith.maximumf %12, %13 : vector<16x128xf32>
    %c0_12 = arith.constant 0 : index
    %c0_13 = arith.constant 0 : index
    %15 = vector.load %arg6[%c0_12, %c0_13] : memref<128x128xf32, #tpu.memory_space<vmem>>, vector<128x128xf32>
    %cst_14 = arith.constant dense<0.000000e+00> : vector<16x128xf32>
    %16 = tpu.matmul %14, %15, %cst_14 {dimension_numbers = #tpu.dot_dimension_numbers<[1], [0], [0], [1], [0, 0, 1, 1], [], []>, precision = #tpu.contract_precision<fp32>} : vector<16x128xf32>, vector<128x128xf32>, vector<16x128xf32> -> vector<16x128xf32>
    %c0_15 = arith.constant 0 : index
    %c0_16 = arith.constant 0 : index
    %17 = vector.load %arg7[%c0_15, %c0_16] : memref<1x128xf32, #tpu.memory_space<vmem>>, vector<1x128xf32>
    %18 = vector.broadcast %17 : vector<1x128xf32> to vector<16x128xf32>
    %19 = arith.addf %16, %18 : vector<16x128xf32>
    %20 = vector.shape_cast %19 : vector<16x128xf32> to vector<2x8x128xf32>
    %cst_17 = arith.constant dense<0.000000e+00> : vector<2x128xf32>
    %21 = vector.multi_reduction <add>, %20, %cst_17 [1] : vector<2x8x128xf32> to vector<2x128xf32>
    %cst_18 = arith.constant 1.250000e-01 : f32
    %22 = vector.broadcast %cst_18 : f32 to vector<2x128xf32>
    %23 = arith.mulf %21, %22 : vector<2x128xf32>
    %c0_19 = arith.constant 0 : index
    %c0_20 = arith.constant 0 : index
    %24 = vector.load %arg8[%c0_19, %c0_20] : memref<2x128xf32, #tpu.memory_space<vmem>>, vector<2x128xf32>
    tpu.vector_store %arg8[%c0_19, %c0_20], %23 {strides = array<i32>} : memref<2x128xf32, #tpu.memory_space<vmem>>, vector<2x128xf32>,
    return
  }
  func.func @transform_0(%arg0: i32) -> (i32, i32) {
    %c0_i32 = arith.constant 0 : i32
    %c0_i32_0 = arith.constant 0 : i32
    return %arg0, %c0_i32 : i32, i32
  }
  func.func @transform_1(%arg0: i32) -> (i32, i32) {
    %c0_i32 = arith.constant 0 : i32
    %c0_i32_0 = arith.constant 0 : i32
    %c0_i32_1 = arith.constant 0 : i32
    return %c0_i32, %c0_i32_0 : i32, i32
  }
  func.func @transform_2(%arg0: i32) -> (i32, i32) {
    %c0_i32 = arith.constant 0 : i32
    %c0_i32_0 = arith.constant 0 : i32
    %c0_i32_1 = arith.constant 0 : i32
    return %c0_i32, %c0_i32_0 : i32, i32
  }
  func.func @transform_3(%arg0: i32) -> (i32, i32) {
    %c0_i32 = arith.constant 0 : i32
    %c0_i32_0 = arith.constant 0 : i32
    %c0_i32_1 = arith.constant 0 : i32
    return %c0_i32, %c0_i32_0 : i32, i32
  }
  func.func @transform_4(%arg0: i32) -> (i32, i32) {
    %c0_i32 = arith.constant 0 : i32
    %c0_i32_0 = arith.constant 0 : i32
    %c0_i32_1 = arith.constant 0 : i32
    return %c0_i32, %c0_i32_0 : i32, i32
  }
  func.func @transform_5(%arg0: i32) -> (i32, i32) {
    %c0_i32 = arith.constant 0 : i32
    %c0_i32_0 = arith.constant 0 : i32
    %c0_i32_1 = arith.constant 0 : i32
    return %c0_i32, %c0_i32_0 : i32, i32
  }
  func.func @transform_6(%arg0: i32) -> (i32, i32) {
    %c0_i32 = arith.constant 0 : i32
    %c0_i32_0 = arith.constant 0 : i32
    %c0_i32_1 = arith.constant 0 : i32
    return %c0_i32, %c0_i32_0 : i32, i32
  }
  func.func @transform_7(%arg0: i32) -> (i32, i32) {
    %c0_i32 = arith.constant 0 : i32
    %c0_i32_0 = arith.constant 0 : i32
    return %arg0, %c0_i32 : i32, i32
  }
}

</mosaic_0001>

<llo_original>
// kernel: tpu_custom_call.1
$region0: #{tpu_custom_call.1}
  #allocation0 [shape = 'u32[]', space=smem, size = 0x4, offset = 0x4, fixed_abs, tag = 'smem constant byte address 0x4 - core index']
  #allocation1 [shape = 'u32[144,128]{1,0:T(1,128)}', space=vmem, size = 0x12000, scoped, tag = 'internal scratch']
  %s0 = inlined_call_operand.hbm [shape: f32[16,128], index: 0, kind: input, shape index: {}]
  %s1 = inlined_call_operand.hbm [shape: f32[128,128], index: 1, kind: input, shape index: {}]
  %s2 = inlined_call_operand.vmem [shape: f32[1,128], index: 2, kind: input, shape index: {}]
  %s3 = inlined_call_operand.hbm [shape: f32[128,128], index: 3, kind: input, shape index: {}]
  %s4 = inlined_call_operand.vmem [shape: f32[1,128], index: 4, kind: input, shape index: {}]
  %s5 = inlined_call_operand.hbm [shape: f32[128,128], index: 5, kind: input, shape index: {}]
  %s6 = inlined_call_operand.vmem [shape: f32[1,128], index: 6, kind: input, shape index: {}]
  %s7 = inlined_call_operand.hbm [shape: f32[2,128], index: 7, kind: output, shape index: {}]
  %s8 = sld [smem:[#allocation0]]
  $region54: #{tpu_custom_call.1} parent=0
    _
  %s10 = ssub.s32 1, %s8
  %s11 = scalar_select 0, %s10, %s8
  $region1: #{tpu_custom_call.1} parent=0
    #allocation2 [shape = 'u8[8192]{0}', space=vmem, size = 0x2000, scoped, tag = 'input window, operand 0, single buffered']
    #allocation3 [shape = 's32[1]{0}', space=sflag, size = 0x4, scoped, tag = 'scoped memory for tpu_custom_call.1']
    #allocation4 [shape = 's32[1]{0}', space=sflag, size = 0x4, scoped, tag = 'scoped memory for tpu_custom_call.1']
    #allocation5 [shape = 'u8[65536]{0}', space=vmem, size = 0x10000, scoped, tag = 'input window, operand 1, single buffered']
    #allocation6 [shape = 's32[1]{0}', space=sflag, size = 0x4, scoped, tag = 'scoped memory for tpu_custom_call.1']
    #allocation7 [shape = 'u8[65536]{0}', space=vmem, size = 0x10000, scoped, tag = 'input window, operand 3, single buffered']
    #allocation8 [shape = 'u8[65536]{0}', space=vmem, size = 0x10000, scoped, tag = 'input window, operand 5, single buffered']
    #allocation9 [shape = 's32[1]{0}', space=sflag, size = 0x4, scoped, tag = 'scoped memory for tpu_custom_call.1']
    #allocation10 [shape = 'u8[1024]{0}', space=vmem, size = 0x400, scoped, tag = 'output window, operand 0, single buffered']
    %12 = vsyncpa [#allocation3], 0
    %13 = vsyncpa [#allocation6], 0
    %14 = vsyncpa [#allocation9], 0
    %15 = vsyncpa [#allocation4], 0
    // Predicated region
    $region2: #{tpu_custom_call.1} parent=1 // pred_check
      _
    $region3: #{tpu_custom_call.1} parent=1 // pred_check_branch
      %17 = sbr.rel (0) target = $region5
    $region4: #{tpu_custom_call.1} parent=1 // pred_region
      %s19 = ssub.s32 256, 256
      %20 = vsyncadd [#allocation3], %s19
      %s21 = sshll.u32 [#allocation2], 4
      %s22 = int_to_ptr.vmem [resolvable:$true] %s21
      %27 = dma.hbm_to_vmem [thread:$0]  %s0, 256, %s22, [#allocation3], 128, 128, 8
    $region5: #{tpu_custom_call.1} parent=1 // pred_fallthru
      _
    // Predicated region
    $region6: #{tpu_custom_call.1} parent=1 // pred_check
      _
    $region7: #{tpu_custom_call.1} parent=1 // pred_check_branch
      %29 = sbr.rel (0) target = $region9
    $region8: #{tpu_custom_call.1} parent=1 // pred_region
      %s31 = ssub.s32 2048, 2048
      %32 = vsyncadd [#allocation6], %s31
      %s33 = sshll.u32 [#allocation5], 4
      %s34 = int_to_ptr.vmem [resolvable:$true] %s33
      %39 = dma.hbm_to_vmem [thread:$0]  %s1, 2048, %s34, [#allocation6], 128, 128, 8
    $region9: #{tpu_custom_call.1} parent=1 // pred_fallthru
      _
    // Predicated region
    $region10: #{tpu_custom_call.1} parent=1 // pred_check
      _
    $region11: #{tpu_custom_call.1} parent=1 // pred_check_branch
      %41 = sbr.rel (0) target = $region13
    $region12: #{tpu_custom_call.1} parent=1 // pred_region
      _
    $region13: #{tpu_custom_call.1} parent=1 // pred_fallthru
      _
    // Predicated region
    $region14: #{tpu_custom_call.1} parent=1 // pred_check
      _
    $region15: #{tpu_custom_call.1} parent=1 // pred_check_branch
      %43 = sbr.rel (0) target = $region17
    $region16: #{tpu_custom_call.1} parent=1 // pred_region
      %s45 = ssub.s32 2048, 2048
      %46 = vsyncadd [#allocation6], %s45
      %s47 = sshll.u32 [#allocation7], 4
      %s48 = int_to_ptr.vmem [resolvable:$true] %s47
      %53 = dma.hbm_to_vmem [thread:$0]  %s3, 2048, %s48, [#allocation6], 128, 128, 8
    $region17: #{tpu_custom_call.1} parent=1 // pred_fallthru
      _
    // Predicated region
    $region18: #{tpu_custom_call.1} parent=1 // pred_check
      _
    $region19: #{tpu_custom_call.1} parent=1 // pred_check_branch
      %55 = sbr.rel (0) target = $region21
    $region20: #{tpu_custom_call.1} parent=1 // pred_region
      _
    $region21: #{tpu_custom_call.1} parent=1 // pred_fallthru
      _
    // Predicated region
    $region22: #{tpu_custom_call.1} parent=1 // pred_check
      _
    $region23: #{tpu_custom_call.1} parent=1 // pred_check_branch
      %57 = sbr.rel (0) target = $region25
    $region24: #{tpu_custom_call.1} parent=1 // pred_region
      %s59 = ssub.s32 2048, 2048
      %60 = vsyncadd [#allocation9], %s59
      %s61 = sshll.u32 [#allocation8], 4
      %s62 = int_to_ptr.vmem [resolvable:$true] %s61
      %67 = dma.hbm_to_vmem [thread:$0]  %s5, 2048, %s62, [#allocation9], 128, 128, 8
    $region25: #{tpu_custom_call.1} parent=1 // pred_fallthru
      _
    // Predicated region
    $region26: #{tpu_custom_call.1} parent=1 // pred_check
      _
    $region27: #{tpu_custom_call.1} parent=1 // pred_check_branch
      %69 = sbr.rel (0) target = $region29
    $region28: #{tpu_custom_call.1} parent=1 // pred_region
      _
    $region29: #{tpu_custom_call.1} parent=1 // pred_fallthru
      _
    // Predicated region
    $region30: #{tpu_custom_call.1} parent=1 // pred_check
      _
    $region31: #{tpu_custom_call.1} parent=1 // pred_check_branch
      %71 = sbr.rel (0) target = $region33
    $region32: #{tpu_custom_call.1} parent=1 // pred_region
      %72 = dma.done [#allocation3], 256
    $region33: #{tpu_custom_call.1} parent=1 // pred_fallthru
      _
    // Predicated region
    $region34: #{tpu_custom_call.1} parent=1 // pred_check
      _
    $region35: #{tpu_custom_call.1} parent=1 // pred_check_branch
      %74 = sbr.rel (0) target = $region37
    $region36: #{tpu_custom_call.1} parent=1 // pred_region
      %75 = dma.done [#allocation6], 2048
    $region37: #{tpu_custom_call.1} parent=1 // pred_fallthru
      _
    // Predicated region
    $region38: #{tpu_custom_call.1} parent=1 // pred_check
      _
    $region39: #{tpu_custom_call.1} parent=1 // pred_check_branch
      %77 = sbr.rel (0) target = $region41
    $region40: #{tpu_custom_call.1} parent=1 // pred_region
      %78 = dma.done [#allocation6], 2048
    $region41: #{tpu_custom_call.1} parent=1 // pred_fallthru
      _
    // Predicated region
    $region42: #{tpu_custom_call.1} parent=1 // pred_check
      _
    $region43: #{tpu_custom_call.1} parent=1 // pred_check_branch
      %80 = sbr.rel (0) target = $region45
    $region44: #{tpu_custom_call.1} parent=1 // pred_region
      %81 = dma.done [#allocation9], 2048
    $region45: #{tpu_custom_call.1} parent=1 // pred_fallthru
      _
    %v82 = vld [vmem:[#allocation2] sm:$0xff]
    %v83 = vld [vmem:[#allocation2 + $0x8] sm:$0xff]
    %v84 = vld [vmem:[#allocation5] sm:$0xff]
    %v85 = vld [vmem:[#allocation5 + $0x8] sm:$0xff]
    %v86 = vld [vmem:[#allocation5 + $0x10] sm:$0xff]
    %v87 = vld [vmem:[#allocation5 + $0x18] sm:$0xff]
    %v88 = vld [vmem:[#allocation5 + $0x20] sm:$0xff]
    %v89 = vld [vmem:[#allocation5 + $0x28] sm:$0xff]
    %v90 = vld [vmem:[#allocation5 + $0x30] sm:$0xff]
    %v91 = vld [vmem:[#allocation5 + $0x38] sm:$0xff]
    %v92 = vld [vmem:[#allocation5 + $0x40] sm:$0xff]
    %v93 = vld [vmem:[#allocation5 + $0x48] sm:$0xff]
    %v94 = vld [vmem:[#allocation5 + $0x50] sm:$0xff]
    %v95 = vld [vmem:[#allocation5 + $0x58] sm:$0xff]
    %v96 = vld [vmem:[#allocation5 + $0x60] sm:$0xff]
    %v97 = vld [vmem:[#allocation5 + $0x68] sm:$0xff]
    %v98 = vld [vmem:[#allocation5 + $0x70] sm:$0xff]
    %v99 = vld [vmem:[#allocation5 + $0x78] sm:$0xff]
    %v100 = vld [vmem:[%s2] sm:$0x1]
    %v102 = vlaneseq
    %v103 = vshrl.u32 %v102, 7
    %v104 = vsub.s32 0, %v103
    %v105 = vrot.slane %v100, %v104
    %107 = vmatprep.subr.mxu0 0.0
    %v108 = vand.u32 %v84, 4294901760
    %109 = vmatpush1.msra.mxu0 %v108
    %110 = vmatprep.subr.mxu0 0.0
    %v111 = vand.u32 %v85, 4294901760
    %112 = vmatpush1.msra.mxu0 %v111
    %113 = vmatprep.subr.mxu0 0.0
    %v114 = vand.u32 %v86, 4294901760
    %115 = vmatpush1.msra.mxu0 %v114
    %116 = vmatprep.subr.mxu0 0.0
    %v117 = vand.u32 %v87, 4294901760
    %118 = vmatpush1.msra.mxu0 %v117
    %119 = vmatprep.subr.mxu0 0.0
    %v120 = vand.u32 %v88, 4294901760
    %121 = vmatpush1.msra.mxu0 %v120
    %122 = vmatprep.subr.mxu0 0.0
    %v123 = vand.u32 %v89, 4294901760
    %124 = vmatpush1.msra.mxu0 %v123
    %125 = vmatprep.subr.mxu0 0.0
    %v126 = vand.u32 %v90, 4294901760
    %127 = vmatpush1.msra.mxu0 %v126
    %128 = vmatprep.subr.mxu0 0.0
    %v129 = vand.u32 %v91, 4294901760
    %130 = vmatpush1.msra.mxu0 %v129
    %131 = vmatprep.subr.mxu0 0.0
    %v132 = vand.u32 %v92, 4294901760
    %133 = vmatpush1.msra.mxu0 %v132
    %134 = vmatprep.subr.mxu0 0.0
    %v135 = vand.u32 %v93, 4294901760
    %136 = vmatpush1.msra.mxu0 %v135
    %137 = vmatprep.subr.mxu0 0.0
    %v138 = vand.u32 %v94, 4294901760
    %139 = vmatpush1.msra.mxu0 %v138
    %140 = vmatprep.subr.mxu0 0.0
    %v141 = vand.u32 %v95, 4294901760
    %142 = vmatpush1.msra.mxu0 %v141
    %143 = vmatprep.subr.mxu0 0.0
    %v144 = vand.u32 %v96, 4294901760
    %145 = vmatpush1.msra.mxu0 %v144
    %146 = vmatprep.subr.mxu0 0.0
    %v147 = vand.u32 %v97, 4294901760
    %148 = vmatpush1.msra.mxu0 %v147
    %149 = vmatprep.subr.mxu0 0.0
    %v150 = vand.u32 %v98, 4294901760
    %151 = vmatpush1.msra.mxu0 %v150
    %152 = vmatprep.subr.mxu0 0.0
    %v153 = vand.u32 %v99, 4294901760
    %154 = vmatpush1.msra.mxu0 %v153
    %155 = vmatprep.subr.mxu0 0.0
    %156 = vmatpush1.msra.mxu0 0.0
    %157 = vmatprep.subr.mxu0 0.0
    %158 = vmatpush1.msra.mxu0 0.0
    %159 = vmatprep.subr.mxu0 0.0
    %160 = vmatpush1.msra.mxu0 0.0
    %161 = vmatprep.subr.mxu0 0.0
    %162 = vmatpush1.msra.mxu0 0.0
    %163 = vmatprep.subr.mxu0 0.0
    %164 = vmatpush1.msra.mxu0 0.0
    %165 = vmatprep.subr.mxu0 0.0
    %166 = vmatpush1.msra.mxu0 0.0
    %167 = vmatprep.subr.mxu0 0.0
    %168 = vmatpush1.msra.mxu0 0.0
    %169 = vmatprep.subr.mxu0 0.0
    %170 = vmatpush1.msra.mxu0 0.0
    %171 = vmatprep.subr.mxu0 0.0
    %172 = vmatpush1.msra.mxu0 0.0
    %173 = vmatprep.subr.mxu0 0.0
    %174 = vmatpush1.msra.mxu0 0.0
    %175 = vmatprep.subr.mxu0 0.0
    %176 = vmatpush1.msra.mxu0 0.0
    %177 = vmatprep.subr.mxu0 0.0
    %178 = vmatpush1.msra.mxu0 0.0
    %179 = vmatprep.subr.mxu0 0.0
    %180 = vmatpush1.msra.mxu0 0.0
    %181 = vmatprep.subr.mxu0 0.0
    %182 = vmatpush1.msra.mxu0 0.0
    %183 = vmatprep.subr.mxu0 0.0
    %184 = vmatpush1.msra.mxu0 0.0
    %185 = vmatprep.subr.mxu0 0.0
    %186 = vmatpush1.msra.mxu0 0.0
    %187 = vmatprep.mubr.f32.mxu0 0.0
    %v188 = vand.u32 %v82, 4294901760
    %v189 = vsub.f32 %v82, %v188
    %v190 = vand.u32 %v189, 4294901760
    %v191 = vsub.f32 %v189, %v190
    %v192 = vand.u32 %v191, 4294901760
    %193 = vmatmul.mubr.f32.gmra.mrb[0].mxu0 %v192
    %v194 = vpop.f32.mrb[0].mxu0
    %v195 = vadd.f32 %v105, %v194
    %v196 = vpop.f32.mrb[0].mxu0
    %197 = vmatprep.mubr.f32.mxu0 0.0
    %v198 = vand.u32 %v83, 4294901760
    %v199 = vsub.f32 %v83, %v198
    %v200 = vand.u32 %v199, 4294901760
    %v201 = vsub.f32 %v199, %v200
    %v202 = vand.u32 %v201, 4294901760
    %203 = vmatmul.mubr.f32.gmra.mrb[0].mxu0 %v202
    %v204 = vpop.f32.mrb[0].mxu0
    %v205 = vadd.f32 %v105, %v204
    %v206 = vpop.f32.mrb[0].mxu0
    %207 = vdwg.mxu0
    %208 = vmatprep.subr.mxu0 0.0
    %v209 = vand.u32 %v84, 4294901760
    %v210 = vsub.f32 %v84, %v209
    %v211 = vand.u32 %v210, 4294901760
    %v212 = vsub.f32 %v210, %v211
    %v213 = vand.u32 %v212, 4294901760
    %214 = vmatpush1.msra.mxu0 %v213
    %215 = vmatprep.subr.mxu0 0.0
    %v216 = vand.u32 %v85, 4294901760
    %v217 = vsub.f32 %v85, %v216
    %v218 = vand.u32 %v217, 4294901760
    %v219 = vsub.f32 %v217, %v218
    %v220 = vand.u32 %v219, 4294901760
    %221 = vmatpush1.msra.mxu0 %v220
    %222 = vmatprep.subr.mxu0 0.0
    %v223 = vand.u32 %v86, 4294901760
    %v224 = vsub.f32 %v86, %v223
    %v225 = vand.u32 %v224, 4294901760
    %v226 = vsub.f32 %v224, %v225
    %v227 = vand.u32 %v226, 4294901760
    %228 = vmatpush1.msra.mxu0 %v227
    %229 = vmatprep.subr.mxu0 0.0
    %v230 = vand.u32 %v87, 4294901760
    %v231 = vsub.f32 %v87, %v230
    %v232 = vand.u32 %v231, 4294901760
    %v233 = vsub.f32 %v231, %v232
    %v234 = vand.u32 %v233, 4294901760
    %235 = vmatpush1.msra.mxu0 %v234
    %236 = vmatprep.subr.mxu0 0.0
    %v237 = vand.u32 %v88, 4294901760
    %v238 = vsub.f32 %v88, %v237
    %v239 = vand.u32 %v238, 4294901760
    %v240 = vsub.f32 %v238, %v239
    %v241 = vand.u32 %v240, 4294901760
    %242 = vmatpush1.msra.mxu0 %v241
    %243 = vmatprep.subr.mxu0 0.0
    %v244 = vand.u32 %v89, 4294901760
    %v245 = vsub.f32 %v89, %v244
    %v246 = vand.u32 %v245, 4294901760
    %v247 = vsub.f32 %v245, %v246
    %v248 = vand.u32 %v247, 4294901760
    %249 = vmatpush1.msra.mxu0 %v248
    %250 = vmatprep.subr.mxu0 0.0
    %v251 = vand.u32 %v90, 4294901760
    %v252 = vsub.f32 %v90, %v251
    %v253 = vand.u32 %v252, 4294901760
    %v254 = vsub.f32 %v252, %v253
    %v255 = vand.u32 %v254, 4294901760
    %256 = vmatpush1.msra.mxu0 %v255
    %257 = vmatprep.subr.mxu0 0.0
    %v258 = vand.u32 %v91, 4294901760
    %v259 = vsub.f32 %v91, %v258
    %v260 = vand.u32 %v259, 4294901760
    %v261 = vsub.f32 %v259, %v260
    %v262 = vand.u32 %v261, 4294901760
    %263 = vmatpush1.msra.mxu0 %v262
    %264 = vmatprep.subr.mxu0 0.0
    %v265 = vand.u32 %v92, 4294901760
    %v266 = vsub.f32 %v92, %v265
    %v267 = vand.u32 %v266, 4294901760
    %v268 = vsub.f32 %v266, %v267
    %v269 = vand.u32 %v268, 4294901760
    %270 = vmatpush1.msra.mxu0 %v269
    %271 = vmatprep.subr.mxu0 0.0
    %v272 = vand.u32 %v93, 4294901760
    %v273 = vsub.f32 %v93, %v272
    %v274 = vand.u32 %v273, 4294901760
    %v275 = vsub.f32 %v273, %v274
    %v276 = vand.u32 %v275, 4294901760
    %277 = vmatpush1.msra.mxu0 %v276
    %278 = vmatprep.subr.mxu0 0.0
    %v279 = vand.u32 %v94, 4294901760
    %v280 = vsub.f32 %v94, %v279
    %v281 = vand.u32 %v280, 4294901760
    %v282 = vsub.f32 %v280, %v281
    %v283 = vand.u32 %v282, 4294901760
    %284 = vmatpush1.msra.mxu0 %v283
    %285 = vmatprep.subr.mxu0 0.0
    %v286 = vand.u32 %v95, 4294901760
    %v287 = vsub.f32 %v95, %v286
    %v288 = vand.u32 %v287, 4294901760
    %v289 = vsub.f32 %v287, %v288
    %v290 = vand.u32 %v289, 4294901760
    %291 = vmatpush1.msra.mxu0 %v290
    %292 = vmatprep.subr.mxu0 0.0
    %v293 = vand.u32 %v96, 4294901760
    %v294 = vsub.f32 %v96, %v293
    %v295 = vand.u32 %v294, 4294901760
    %v296 = vsub.f32 %v294, %v295
    %v297 = vand.u32 %v296, 4294901760
    %298 = vmatpush1.msra.mxu0 %v297
    %299 = vmatprep.subr.mxu0 0.0
    %v300 = vand.u32 %v97, 4294901760
    %v301 = vsub.f32 %v97, %v300
    %v302 = vand.u32 %v301, 4294901760
    %v303 = vsub.f32 %v301, %v302
    %v304 = vand.u32 %v303, 4294901760
    %305 = vmatpush1.msra.mxu0 %v304
    %306 = vmatprep.subr.mxu0 0.0
    %v307 = vand.u32 %v98, 4294901760
    %v308 = vsub.f32 %v98, %v307
    %v309 = vand.u32 %v308, 4294901760
    %v310 = vsub.f32 %v308, %v309
    %v311 = vand.u32 %v310, 4294901760
    %312 = vmatpush1.msra.mxu0 %v311
    %313 = vmatprep.subr.mxu0 0.0
    %v314 = vand.u32 %v99, 4294901760
    %v315 = vsub.f32 %v99, %v314
    %v316 = vand.u32 %v315, 4294901760
    %v317 = vsub.f32 %v315, %v316
    %v318 = vand.u32 %v317, 4294901760
    %319 = vmatpush1.msra.mxu0 %v318
    %320 = vmatprep.subr.mxu0 0.0
    %321 = vmatpush1.msra.mxu0 0.0
    %322 = vmatprep.subr.mxu0 0.0
    %323 = vmatpush1.msra.mxu0 0.0
    %324 = vmatprep.subr.mxu0 0.0
    %325 = vmatpush1.msra.mxu0 0.0
    %326 = vmatprep.subr.mxu0 0.0
    %327 = vmatpush1.msra.mxu0 0.0
    %328 = vmatprep.subr.mxu0 0.0
    %329 = vmatpush1.msra.mxu0 0.0
    %330 = vmatprep.subr.mxu0 0.0
    %331 = vmatpush1.msra.mxu0 0.0
    %332 = vmatprep.subr.mxu0 0.0
    %333 = vmatpush1.msra.mxu0 0.0
    %334 = vmatprep.subr.mxu0 0.0
    %335 = vmatpush1.msra.mxu0 0.0
    %336 = vmatprep.subr.mxu0 0.0
    %337 = vmatpush1.msra.mxu0 0.0
    %338 = vmatprep.subr.mxu0 0.0
    %339 = vmatpush1.msra.mxu0 0.0
    %340 = vmatprep.subr.mxu0 0.0
    %341 = vmatpush1.msra.mxu0 0.0
    %342 = vmatprep.subr.mxu0 0.0
    %343 = vmatpush1.msra.mxu0 0.0
    %344 = vmatprep.subr.mxu0 0.0
    %345 = vmatpush1.msra.mxu0 0.0
    %346 = vmatprep.subr.mxu0 0.0
    %347 = vmatpush1.msra.mxu0 0.0
    %348 = vmatprep.subr.mxu0 0.0
    %349 = vmatpush1.msra.mxu0 0.0
    %350 = vmatprep.subr.mxu0 0.0
    %351 = vmatpush1.msra.mxu0 0.0
    %352 = vmatprep.mubr.f32.mxu0 0.0
    %v353 = vand.u32 %v82, 4294901760
    %354 = vmatmul.mubr.f32.gmra.mrb[0].mxu0 %v353
    %v355 = vpop.f32.mrb[0].mxu0
    %v356 = vadd.f32 %v195, %v355
    %v357 = vpop.f32.mrb[0].mxu0
    %358 = vmatprep.mubr.f32.mxu0 0.0
    %v359 = vand.u32 %v83, 4294901760
    %360 = vmatmul.mubr.f32.gmra.mrb[0].mxu0 %v359
    %v361 = vpop.f32.mrb[0].mxu0
    %v362 = vadd.f32 %v205, %v361
    %v363 = vpop.f32.mrb[0].mxu0
    %364 = vdwg.mxu0
    %365 = vmatprep.subr.mxu0 0.0
    %v366 = vand.u32 %v84, 4294901760
    %v367 = vsub.f32 %v84, %v366
    %368 = vmatpush1.msra.mxu0 %v367
    %369 = vmatprep.subr.mxu0 0.0
    %v370 = vand.u32 %v85, 4294901760
    %v371 = vsub.f32 %v85, %v370
    %372 = vmatpush1.msra.mxu0 %v371
    %373 = vmatprep.subr.mxu0 0.0
    %v374 = vand.u32 %v86, 4294901760
    %v375 = vsub.f32 %v86, %v374
    %376 = vmatpush1.msra.mxu0 %v375
    %377 = vmatprep.subr.mxu0 0.0
    %v378 = vand.u32 %v87, 4294901760
    %v379 = vsub.f32 %v87, %v378
    %380 = vmatpush1.msra.mxu0 %v379
    %381 = vmatprep.subr.mxu0 0.0
    %v382 = vand.u32 %v88, 4294901760
    %v383 = vsub.f32 %v88, %v382
    %384 = vmatpush1.msra.mxu0 %v383
    %385 = vmatprep.subr.mxu0 0.0
    %v386 = vand.u32 %v89, 4294901760
    %v387 = vsub.f32 %v89, %v386
    %388 = vmatpush1.msra.mxu0 %v387
    %389 = vmatprep.subr.mxu0 0.0
    %v390 = vand.u32 %v90, 4294901760
    %v391 = vsub.f32 %v90, %v390
    %392 = vmatpush1.msra.mxu0 %v391
    %393 = vmatprep.subr.mxu0 0.0
    %v394 = vand.u32 %v91, 4294901760
    %v395 = vsub.f32 %v91, %v394
    %396 = vmatpush1.msra.mxu0 %v395
    %397 = vmatprep.subr.mxu0 0.0
    %v398 = vand.u32 %v92, 4294901760
    %v399 = vsub.f32 %v92, %v398
    %400 = vmatpush1.msra.mxu0 %v399
    %401 = vmatprep.subr.mxu0 0.0
    %v402 = vand.u32 %v93, 4294901760
    %v403 = vsub.f32 %v93, %v402
    %404 = vmatpush1.msra.mxu0 %v403
    %405 = vmatprep.subr.mxu0 0.0
    %v406 = vand.u32 %v94, 4294901760
    %v407 = vsub.f32 %v94, %v406
    %408 = vmatpush1.msra.mxu0 %v407
    %409 = vmatprep.subr.mxu0 0.0
    %v410 = vand.u32 %v95, 4294901760
    %v411 = vsub.f32 %v95, %v410
    %412 = vmatpush1.msra.mxu0 %v411
    %413 = vmatprep.subr.mxu0 0.0
    %v414 = vand.u32 %v96, 4294901760
    %v415 = vsub.f32 %v96, %v414
    %416 = vmatpush1.msra.mxu0 %v415
    %417 = vmatprep.subr.mxu0 0.0
    %v418 = vand.u32 %v97, 4294901760
    %v419 = vsub.f32 %v97, %v418
    %420 = vmatpush1.msra.mxu0 %v419
    %421 = vmatprep.subr.mxu0 0.0
    %v422 = vand.u32 %v98, 4294901760
    %v423 = vsub.f32 %v98, %v422
    %424 = vmatpush1.msra.mxu0 %v423
    %425 = vmatprep.subr.mxu0 0.0
    %v426 = vand.u32 %v99, 4294901760
    %v427 = vsub.f32 %v99, %v426
    %428 = vmatpush1.msra.mxu0 %v427
    %429 = vmatprep.subr.mxu0 0.0
    %430 = vmatpush1.msra.mxu0 0.0
    %431 = vmatprep.subr.mxu0 0.0
    %432 = vmatpush1.msra.mxu0 0.0
    %433 = vmatprep.subr.mxu0 0.0
    %434 = vmatpush1.msra.mxu0 0.0
    %435 = vmatprep.subr.mxu0 0.0
    %436 = vmatpush1.msra.mxu0 0.0
    %437 = vmatprep.subr.mxu0 0.0
    %438 = vmatpush1.msra.mxu0 0.0
    %439 = vmatprep.subr.mxu0 0.0
    %440 = vmatpush1.msra.mxu0 0.0
    %441 = vmatprep.subr.mxu0 0.0
    %442 = vmatpush1.msra.mxu0 0.0
    %443 = vmatprep.subr.mxu0 0.0
    %444 = vmatpush1.msra.mxu0 0.0
    %445 = vmatprep.subr.mxu0 0.0
    %446 = vmatpush1.msra.mxu0 0.0
    %447 = vmatprep.subr.mxu0 0.0
    %448 = vmatpush1.msra.mxu0 0.0
    %449 = vmatprep.subr.mxu0 0.0
    %450 = vmatpush1.msra.mxu0 0.0
    %451 = vmatprep.subr.mxu0 0.0
    %452 = vmatpush1.msra.mxu0 0.0
    %453 = vmatprep.subr.mxu0 0.0
    %454 = vmatpush1.msra.mxu0 0.0
    %455 = vmatprep.subr.mxu0 0.0
    %456 = vmatpush1.msra.mxu0 0.0
    %457 = vmatprep.subr.mxu0 0.0
    %458 = vmatpush1.msra.mxu0 0.0
    %459 = vmatprep.subr.mxu0 0.0
    %460 = vmatpush1.msra.mxu0 0.0
    %461 = vmatprep.mubr.f32.mxu0 0.0
    %v462 = vand.u32 %v82, 4294901760
    %v463 = vsub.f32 %v82, %v462
    %464 = vmatmul.mubr.f32.gmra.mrb[0].mxu0 %v463
    %v465 = vpop.f32.mrb[0].mxu0
    %v466 = vadd.f32 %v356, %v465
    %v467 = vpop.f32.mrb[0].mxu0
    %468 = vmatprep.mubr.f32.mxu0 0.0
    %v469 = vand.u32 %v83, 4294901760
    %v470 = vsub.f32 %v83, %v469
    %471 = vmatmul.mubr.f32.gmra.mrb[0].mxu0 %v470
    %v472 = vpop.f32.mrb[0].mxu0
    %v473 = vadd.f32 %v362, %v472
    %v474 = vpop.f32.mrb[0].mxu0
    %475 = vdwg.mxu0
    %476 = vmatprep.subr.mxu0 0.0
    %v477 = vand.u32 %v84, 4294901760
    %478 = vmatpush1.msra.mxu0 %v477
    %479 = vmatprep.subr.mxu0 0.0
    %v480 = vand.u32 %v85, 4294901760
    %481 = vmatpush1.msra.mxu0 %v480
    %482 = vmatprep.subr.mxu0 0.0
    %v483 = vand.u32 %v86, 4294901760
    %484 = vmatpush1.msra.mxu0 %v483
    %485 = vmatprep.subr.mxu0 0.0
    %v486 = vand.u32 %v87, 4294901760
    %487 = vmatpush1.msra.mxu0 %v486
    %488 = vmatprep.subr.mxu0 0.0
    %v489 = vand.u32 %v88, 4294901760
    %490 = vmatpush1.msra.mxu0 %v489
    %491 = vmatprep.subr.mxu0 0.0
    %v492 = vand.u32 %v89, 4294901760
    %493 = vmatpush1.msra.mxu0 %v492
    %494 = vmatprep.subr.mxu0 0.0
    %v495 = vand.u32 %v90, 4294901760
    %496 = vmatpush1.msra.mxu0 %v495
    %497 = vmatprep.subr.mxu0 0.0
    %v498 = vand.u32 %v91, 4294901760
    %499 = vmatpush1.msra.mxu0 %v498
    %500 = vmatprep.subr.mxu0 0.0
    %v501 = vand.u32 %v92, 4294901760
    %502 = vmatpush1.msra.mxu0 %v501
    %503 = vmatprep.subr.mxu0 0.0
    %v504 = vand.u32 %v93, 4294901760
    %505 = vmatpush1.msra.mxu0 %v504
    %506 = vmatprep.subr.mxu0 0.0
    %v507 = vand.u32 %v94, 4294901760
    %508 = vmatpush1.msra.mxu0 %v507
    %509 = vmatprep.subr.mxu0 0.0
    %v510 = vand.u32 %v95, 4294901760
    %511 = vmatpush1.msra.mxu0 %v510
    %512 = vmatprep.subr.mxu0 0.0
    %v513 = vand.u32 %v96, 4294901760
    %514 = vmatpush1.msra.mxu0 %v513
    %515 = vmatprep.subr.mxu0 0.0
    %v516 = vand.u32 %v97, 4294901760
    %517 = vmatpush1.msra.mxu0 %v516
    %518 = vmatprep.subr.mxu0 0.0
    %v519 = vand.u32 %v98, 4294901760
    %520 = vmatpush1.msra.mxu0 %v519
    %521 = vmatprep.subr.mxu0 0.0
    %v522 = vand.u32 %v99, 4294901760
    %523 = vmatpush1.msra.mxu0 %v522
    %524 = vmatprep.subr.mxu0 0.0
    %525 = vmatpush1.msra.mxu0 0.0
    %526 = vmatprep.subr.mxu0 0.0
    %527 = vmatpush1.msra.mxu0 0.0
    %528 = vmatprep.subr.mxu0 0.0
    %529 = vmatpush1.msra.mxu0 0.0
    %530 = vmatprep.subr.mxu0 0.0
    %531 = vmatpush1.msra.mxu0 0.0
    %532 = vmatprep.subr.mxu0 0.0
    %533 = vmatpush1.msra.mxu0 0.0
    %534 = vmatprep.subr.mxu0 0.0
    %535 = vmatpush1.msra.mxu0 0.0
    %536 = vmatprep.subr.mxu0 0.0
    %537 = vmatpush1.msra.mxu0 0.0
    %538 = vmatprep.subr.mxu0 0.0
    %539 = vmatpush1.msra.mxu0 0.0
    %540 = vmatprep.subr.mxu0 0.0
    %541 = vmatpush1.msra.mxu0 0.0
    %542 = vmatprep.subr.mxu0 0.0
    %543 = vmatpush1.msra.mxu0 0.0
    %544 = vmatprep.subr.mxu0 0.0
    %545 = vmatpush1.msra.mxu0 0.0
    %546 = vmatprep.subr.mxu0 0.0
    %547 = vmatpush1.msra.mxu0 0.0
    %548 = vmatprep.subr.mxu0 0.0
    %549 = vmatpush1.msra.mxu0 0.0
    %550 = vmatprep.subr.mxu0 0.0
    %551 = vmatpush1.msra.mxu0 0.0
    %552 = vmatprep.subr.mxu0 0.0
    %553 = vmatpush1.msra.mxu0 0.0
    %554 = vmatprep.subr.mxu0 0.0
    %555 = vmatpush1.msra.mxu0 0.0
    %556 = vmatprep.mubr.f32.mxu0 0.0
    %v557 = vand.u32 %v82, 4294901760
    %v558 = vsub.f32 %v82, %v557
    %v559 = vand.u32 %v558, 4294901760
    %560 = vmatmul.mubr.f32.gmra.mrb[0].mxu0 %v559
    %v561 = vpop.f32.mrb[0].mxu0
    %v562 = vadd.f32 %v466, %v561
    %v563 = vpop.f32.mrb[0].mxu0
    %564 = vmatprep.mubr.f32.mxu0 0.0
    %v565 = vand.u32 %v83, 4294901760
    %v566 = vsub.f32 %v83, %v565
    %v567 = vand.u32 %v566, 4294901760
    %568 = vmatmul.mubr.f32.gmra.mrb[0].mxu0 %v567
    %v569 = vpop.f32.mrb[0].mxu0
    %v570 = vadd.f32 %v473, %v569
    %v571 = vpop.f32.mrb[0].mxu0
    %572 = vdwg.mxu0
    %573 = vmatprep.subr.mxu0 0.0
    %v574 = vand.u32 %v84, 4294901760
    %v575 = vsub.f32 %v84, %v574
    %v576 = vand.u32 %v575, 4294901760
    %577 = vmatpush1.msra.mxu0 %v576
    %578 = vmatprep.subr.mxu0 0.0
    %v579 = vand.u32 %v85, 4294901760
    %v580 = vsub.f32 %v85, %v579
    %v581 = vand.u32 %v580, 4294901760
    %582 = vmatpush1.msra.mxu0 %v581
    %583 = vmatprep.subr.mxu0 0.0
    %v584 = vand.u32 %v86, 4294901760
    %v585 = vsub.f32 %v86, %v584
    %v586 = vand.u32 %v585, 4294901760
    %587 = vmatpush1.msra.mxu0 %v586
    %588 = vmatprep.subr.mxu0 0.0
    %v589 = vand.u32 %v87, 4294901760
    %v590 = vsub.f32 %v87, %v589
    %v591 = vand.u32 %v590, 4294901760
    %592 = vmatpush1.msra.mxu0 %v591
    %593 = vmatprep.subr.mxu0 0.0
    %v594 = vand.u32 %v88, 4294901760
    %v595 = vsub.f32 %v88, %v594
    %v596 = vand.u32 %v595, 4294901760
    %597 = vmatpush1.msra.mxu0 %v596
    %598 = vmatprep.subr.mxu0 0.0
    %v599 = vand.u32 %v89, 4294901760
    %v600 = vsub.f32 %v89, %v599
    %v601 = vand.u32 %v600, 4294901760
    %602 = vmatpush1.msra.mxu0 %v601
    %603 = vmatprep.subr.mxu0 0.0
    %v604 = vand.u32 %v90, 4294901760
    %v605 = vsub.f32 %v90, %v604
    %v606 = vand.u32 %v605, 4294901760
    %607 = vmatpush1.msra.mxu0 %v606
    %608 = vmatprep.subr.mxu0 0.0
    %v609 = vand.u32 %v91, 4294901760
    %v610 = vsub.f32 %v91, %v609
    %v611 = vand.u32 %v610, 4294901760
    %612 = vmatpush1.msra.mxu0 %v611
    %613 = vmatprep.subr.mxu0 0.0
    %v614 = vand.u32 %v92, 4294901760
    %v615 = vsub.f32 %v92, %v614
    %v616 = vand.u32 %v615, 4294901760
    %617 = vmatpush1.msra.mxu0 %v616
    %618 = vmatprep.subr.mxu0 0.0
    %v619 = vand.u32 %v93, 4294901760
    %v620 = vsub.f32 %v93, %v619
    %v621 = vand.u32 %v620, 4294901760
    %622 = vmatpush1.msra.mxu0 %v621
    %623 = vmatprep.subr.mxu0 0.0
    %v624 = vand.u32 %v94, 4294901760
    %v625 = vsub.f32 %v94, %v624
    %v626 = vand.u32 %v625, 4294901760
    %627 = vmatpush1.msra.mxu0 %v626
    %628 = vmatprep.subr.mxu0 0.0
    %v629 = vand.u32 %v95, 4294901760
    %v630 = vsub.f32 %v95, %v629
    %v631 = vand.u32 %v630, 4294901760
    %632 = vmatpush1.msra.mxu0 %v631
    %633 = vmatprep.subr.mxu0 0.0
    %v634 = vand.u32 %v96, 4294901760
    %v635 = vsub.f32 %v96, %v634
    %v636 = vand.u32 %v635, 4294901760
    %637 = vmatpush1.msra.mxu0 %v636
    %638 = vmatprep.subr.mxu0 0.0
    %v639 = vand.u32 %v97, 4294901760
    %v640 = vsub.f32 %v97, %v639
    %v641 = vand.u32 %v640, 4294901760
    %642 = vmatpush1.msra.mxu0 %v641
    %643 = vmatprep.subr.mxu0 0.0
    %v644 = vand.u32 %v98, 4294901760
    %v645 = vsub.f32 %v98, %v644
    %v646 = vand.u32 %v645, 4294901760
    %647 = vmatpush1.msra.mxu0 %v646
    %648 = vmatprep.subr.mxu0 0.0
    %v649 = vand.u32 %v99, 4294901760
    %v650 = vsub.f32 %v99, %v649
    %v651 = vand.u32 %v650, 4294901760
    %652 = vmatpush1.msra.mxu0 %v651
    %653 = vmatprep.subr.mxu0 0.0
    %654 = vmatpush1.msra.mxu0 0.0
    %655 = vmatprep.subr.mxu0 0.0
    %656 = vmatpush1.msra.mxu0 0.0
    %657 = vmatprep.subr.mxu0 0.0
    %658 = vmatpush1.msra.mxu0 0.0
    %659 = vmatprep.subr.mxu0 0.0
    %660 = vmatpush1.msra.mxu0 0.0
    %661 = vmatprep.subr.mxu0 0.0
    %662 = vmatpush1.msra.mxu0 0.0
    %663 = vmatprep.subr.mxu0 0.0
    %664 = vmatpush1.msra.mxu0 0.0
    %665 = vmatprep.subr.mxu0 0.0
    %666 = vmatpush1.msra.mxu0 0.0
    %667 = vmatprep.subr.mxu0 0.0
    %668 = vmatpush1.msra.mxu0 0.0
    %669 = vmatprep.subr.mxu0 0.0
    %670 = vmatpush1.msra.mxu0 0.0
    %671 = vmatprep.subr.mxu0 0.0
    %672 = vmatpush1.msra.mxu0 0.0
    %673 = vmatprep.subr.mxu0 0.0
    %674 = vmatpush1.msra.mxu0 0.0
    %675 = vmatprep.subr.mxu0 0.0
    %676 = vmatpush1.msra.mxu0 0.0
    %677 = vmatprep.subr.mxu0 0.0
    %678 = vmatpush1.msra.mxu0 0.0
    %679 = vmatprep.subr.mxu0 0.0
    %680 = vmatpush1.msra.mxu0 0.0
    %681 = vmatprep.subr.mxu0 0.0
    %682 = vmatpush1.msra.mxu0 0.0
    %683 = vmatprep.subr.mxu0 0.0
    %684 = vmatpush1.msra.mxu0 0.0
    %685 = vmatprep.mubr.f32.mxu0 0.0
    %v686 = vand.u32 %v82, 4294901760
    %687 = vmatmul.mubr.f32.gmra.mrb[0].mxu0 %v686
    %v688 = vpop.f32.mrb[0].mxu0
    %v689 = vadd.f32 %v562, %v688
    %v690 = vpop.f32.mrb[0].mxu0
    %691 = vmatprep.mubr.f32.mxu0 0.0
    %v692 = vand.u32 %v83, 4294901760
    %693 = vmatmul.mubr.f32.gmra.mrb[0].mxu0 %v692
    %v694 = vpop.f32.mrb[0].mxu0
    %v695 = vadd.f32 %v570, %v694
    %v696 = vpop.f32.mrb[0].mxu0
    %697 = vdwg.mxu0
    %698 = vmatprep.subr.mxu0 0.0
    %v699 = vand.u32 %v84, 4294901760
    %700 = vmatpush1.msra.mxu0 %v699
    %701 = vmatprep.subr.mxu0 0.0
    %v702 = vand.u32 %v85, 4294901760
    %703 = vmatpush1.msra.mxu0 %v702
    %704 = vmatprep.subr.mxu0 0.0
    %v705 = vand.u32 %v86, 4294901760
    %706 = vmatpush1.msra.mxu0 %v705
    %707 = vmatprep.subr.mxu0 0.0
    %v708 = vand.u32 %v87, 4294901760
    %709 = vmatpush1.msra.mxu0 %v708
    %710 = vmatprep.subr.mxu0 0.0
    %v711 = vand.u32 %v88, 4294901760
    %712 = vmatpush1.msra.mxu0 %v711
    %713 = vmatprep.subr.mxu0 0.0
    %v714 = vand.u32 %v89, 4294901760
    %715 = vmatpush1.msra.mxu0 %v714
    %716 = vmatprep.subr.mxu0 0.0
    %v717 = vand.u32 %v90, 4294901760
    %718 = vmatpush1.msra.mxu0 %v717
    %719 = vmatprep.subr.mxu0 0.0
    %v720 = vand.u32 %v91, 4294901760
    %721 = vmatpush1.msra.mxu0 %v720
    %722 = vmatprep.subr.mxu0 0.0
    %v723 = vand.u32 %v92, 4294901760
    %724 = vmatpush1.msra.mxu0 %v723
    %725 = vmatprep.subr.mxu0 0.0
    %v726 = vand.u32 %v93, 4294901760
    %727 = vmatpush1.msra.mxu0 %v726
    %728 = vmatprep.subr.mxu0 0.0
    %v729 = vand.u32 %v94, 4294901760
    %730 = vmatpush1.msra.mxu0 %v729
    %731 = vmatprep.subr.mxu0 0.0
    %v732 = vand.u32 %v95, 4294901760
    %733 = vmatpush1.msra.mxu0 %v732
    %734 = vmatprep.subr.mxu0 0.0
    %v735 = vand.u32 %v96, 4294901760
    %736 = vmatpush1.msra.mxu0 %v735
    %737 = vmatprep.subr.mxu0 0.0
    %v738 = vand.u32 %v97, 4294901760
    %739 = vmatpush1.msra.mxu0 %v738
    %740 = vmatprep.subr.mxu0 0.0
    %v741 = vand.u32 %v98, 4294901760
    %742 = vmatpush1.msra.mxu0 %v741
    %743 = vmatprep.subr.mxu0 0.0
    %v744 = vand.u32 %v99, 4294901760
    %745 = vmatpush1.msra.mxu0 %v744
    %746 = vmatprep.subr.mxu0 0.0
    %747 = vmatpush1.msra.mxu0 0.0
    %748 = vmatprep.subr.mxu0 0.0
    %749 = vmatpush1.msra.mxu0 0.0
    %750 = vmatprep.subr.mxu0 0.0
    %751 = vmatpush1.msra.mxu0 0.0
    %752 = vmatprep.subr.mxu0 0.0
    %753 = vmatpush1.msra.mxu0 0.0
    %754 = vmatprep.subr.mxu0 0.0
    %755 = vmatpush1.msra.mxu0 0.0
    %756 = vmatprep.subr.mxu0 0.0
    %757 = vmatpush1.msra.mxu0 0.0
    %758 = vmatprep.subr.mxu0 0.0
    %759 = vmatpush1.msra.mxu0 0.0
    %760 = vmatprep.subr.mxu0 0.0
    %761 = vmatpush1.msra.mxu0 0.0
    %762 = vmatprep.subr.mxu0 0.0
    %763 = vmatpush1.msra.mxu0 0.0
    %764 = vmatprep.subr.mxu0 0.0
    %765 = vmatpush1.msra.mxu0 0.0
    %766 = vmatprep.subr.mxu0 0.0
    %767 = vmatpush1.msra.mxu0 0.0
    %768 = vmatprep.subr.mxu0 0.0
    %769 = vmatpush1.msra.mxu0 0.0
    %770 = vmatprep.subr.mxu0 0.0
    %771 = vmatpush1.msra.mxu0 0.0
    %772 = vmatprep.subr.mxu0 0.0
    %773 = vmatpush1.msra.mxu0 0.0
    %774 = vmatprep.subr.mxu0 0.0
    %775 = vmatpush1.msra.mxu0 0.0
    %776 = vmatprep.subr.mxu0 0.0
    %777 = vmatpush1.msra.mxu0 0.0
    %778 = vmatprep.mubr.f32.mxu0 0.0
    %v779 = vand.u32 %v82, 4294901760
    %780 = vmatmul.mubr.f32.gmra.mrb[0].mxu0 %v779
    %v781 = vpop.f32.mrb[0].mxu0
    %v782 = vadd.f32 %v689, %v781
    %v783 = vpop.f32.mrb[0].mxu0
    %784 = vmatprep.mubr.f32.mxu0 0.0
    %v785 = vand.u32 %v83, 4294901760
    %786 = vmatmul.mubr.f32.gmra.mrb[0].mxu0 %v785
    %v787 = vpop.f32.mrb[0].mxu0
    %v788 = vadd.f32 %v695, %v787
    %v789 = vpop.f32.mrb[0].mxu0
    %790 = vdwg.mxu0
    %v791 = vmax.f32 %v782, 0.0
    %v792 = vmax.f32 %v788, 0.0
    %v793 = vld [vmem:[#allocation7] sm:$0xff]
    %v794 = vld [vmem:[#allocation7 + $0x8] sm:$0xff]
    %v795 = vld [vmem:[#allocation7 + $0x10] sm:$0xff]
    %v796 = vld [vmem:[#allocation7 + $0x18] sm:$0xff]
    %v797 = vld [vmem:[#allocation7 + $0x20] sm:$0xff]
    %v798 = vld [vmem:[#allocation7 + $0x28] sm:$0xff]
    %v799 = vld [vmem:[#allocation7 + $0x30] sm:$0xff]
    %v800 = vld [vmem:[#allocation7 + $0x38] sm:$0xff]
    %v801 = vld [vmem:[#allocation7 + $0x40] sm:$0xff]
    %v802 = vld [vmem:[#allocation7 + $0x48] sm:$0xff]
    %v803 = vld [vmem:[#allocation7 + $0x50] sm:$0xff]
    %v804 = vld [vmem:[#allocation7 + $0x58] sm:$0xff]
    %v805 = vld [vmem:[#allocation7 + $0x60] sm:$0xff]
    %v806 = vld [vmem:[#allocation7 + $0x68] sm:$0xff]
    %v807 = vld [vmem:[#allocation7 + $0x70] sm:$0xff]
    %v808 = vld [vmem:[#allocation7 + $0x78] sm:$0xff]
    %v809 = vld [vmem:[%s4] sm:$0x1]
    %v811 = vlaneseq
    %v812 = vshrl.u32 %v811, 7
    %v813 = vsub.s32 0, %v812
    %v814 = vrot.slane %v809, %v813
    %816 = vmatprep.subr.mxu0 0.0
    %v817 = vand.u32 %v793, 4294901760
    %818 = vmatpush1.msra.mxu0 %v817
    %819 = vmatprep.subr.mxu0 0.0
    %v820 = vand.u32 %v794, 4294901760
    %821 = vmatpush1.msra.mxu0 %v820
    %822 = vmatprep.subr.mxu0 0.0
    %v823 = vand.u32 %v795, 4294901760
    %824 = vmatpush1.msra.mxu0 %v823
    %825 = vmatprep.subr.mxu0 0.0
    %v826 = vand.u32 %v796, 4294901760
    %827 = vmatpush1.msra.mxu0 %v826
    %828 = vmatprep.subr.mxu0 0.0
    %v829 = vand.u32 %v797, 4294901760
    %830 = vmatpush1.msra.mxu0 %v829
    %831 = vmatprep.subr.mxu0 0.0
    %v832 = vand.u32 %v798, 4294901760
    %833 = vmatpush1.msra.mxu0 %v832
    %834 = vmatprep.subr.mxu0 0.0
    %v835 = vand.u32 %v799, 4294901760
    %836 = vmatpush1.msra.mxu0 %v835
    %837 = vmatprep.subr.mxu0 0.0
    %v838 = vand.u32 %v800, 4294901760
    %839 = vmatpush1.msra.mxu0 %v838
    %840 = vmatprep.subr.mxu0 0.0
    %v841 = vand.u32 %v801, 4294901760
    %842 = vmatpush1.msra.mxu0 %v841
    %843 = vmatprep.subr.mxu0 0.0
    %v844 = vand.u32 %v802, 4294901760
    %845 = vmatpush1.msra.mxu0 %v844
    %846 = vmatprep.subr.mxu0 0.0
    %v847 = vand.u32 %v803, 4294901760
    %848 = vmatpush1.msra.mxu0 %v847
    %849 = vmatprep.subr.mxu0 0.0
    %v850 = vand.u32 %v804, 4294901760
    %851 = vmatpush1.msra.mxu0 %v850
    %852 = vmatprep.subr.mxu0 0.0
    %v853 = vand.u32 %v805, 4294901760
    %854 = vmatpush1.msra.mxu0 %v853
    %855 = vmatprep.subr.mxu0 0.0
    %v856 = vand.u32 %v806, 4294901760
    %857 = vmatpush1.msra.mxu0 %v856
    %858 = vmatprep.subr.mxu0 0.0
    %v859 = vand.u32 %v807, 4294901760
    %860 = vmatpush1.msra.mxu0 %v859
    %861 = vmatprep.subr.mxu0 0.0
    %v862 = vand.u32 %v808, 4294901760
    %863 = vmatpush1.msra.mxu0 %v862
    %864 = vmatprep.subr.mxu0 0.0
    %865 = vmatpush1.msra.mxu0 0.0
    %866 = vmatprep.subr.mxu0 0.0
    %867 = vmatpush1.msra.mxu0 0.0
    %868 = vmatprep.subr.mxu0 0.0
    %869 = vmatpush1.msra.mxu0 0.0
    %870 = vmatprep.subr.mxu0 0.0
    %871 = vmatpush1.msra.mxu0 0.0
    %872 = vmatprep.subr.mxu0 0.0
    %873 = vmatpush1.msra.mxu0 0.0
    %874 = vmatprep.subr.mxu0 0.0
    %875 = vmatpush1.msra.mxu0 0.0
    %876 = vmatprep.subr.mxu0 0.0
    %877 = vmatpush1.msra.mxu0 0.0
    %878 = vmatprep.subr.mxu0 0.0
    %879 = vmatpush1.msra.mxu0 0.0
    %880 = vmatprep.subr.mxu0 0.0
    %881 = vmatpush1.msra.mxu0 0.0
    %882 = vmatprep.subr.mxu0 0.0
    %883 = vmatpush1.msra.mxu0 0.0
    %884 = vmatprep.subr.mxu0 0.0
    %885 = vmatpush1.msra.mxu0 0.0
    %886 = vmatprep.subr.mxu0 0.0
    %887 = vmatpush1.msra.mxu0 0.0
    %888 = vmatprep.subr.mxu0 0.0
    %889 = vmatpush1.msra.mxu0 0.0
    %890 = vmatprep.subr.mxu0 0.0
    %891 = vmatpush1.msra.mxu0 0.0
    %892 = vmatprep.subr.mxu0 0.0
    %893 = vmatpush1.msra.mxu0 0.0
    %894 = vmatprep.subr.mxu0 0.0
    %895 = vmatpush1.msra.mxu0 0.0
    %896 = vmatprep.mubr.f32.mxu0 0.0
    %v897 = vand.u32 %v791, 4294901760
    %v898 = vsub.f32 %v791, %v897
    %v899 = vand.u32 %v898, 4294901760
    %v900 = vsub.f32 %v898, %v899
    %v901 = vand.u32 %v900, 4294901760
    %902 = vmatmul.mubr.f32.gmra.mrb[0].mxu0 %v901
    %v903 = vpop.f32.mrb[0].mxu0
    %v904 = vadd.f32 %v814, %v903
    %v905 = vpop.f32.mrb[0].mxu0
    %906 = vmatprep.mubr.f32.mxu0 0.0
    %v907 = vand.u32 %v792, 4294901760
    %v908 = vsub.f32 %v792, %v907
    %v909 = vand.u32 %v908, 4294901760
    %v910 = vsub.f32 %v908, %v909
    %v911 = vand.u32 %v910, 4294901760
    %912 = vmatmul.mubr.f32.gmra.mrb[0].mxu0 %v911
    %v913 = vpop.f32.mrb[0].mxu0
    %v914 = vadd.f32 %v814, %v913
    %v915 = vpop.f32.mrb[0].mxu0
    %916 = vdwg.mxu0
    %917 = vmatprep.subr.mxu0 0.0
    %v918 = vand.u32 %v793, 4294901760
    %v919 = vsub.f32 %v793, %v918
    %v920 = vand.u32 %v919, 4294901760
    %v921 = vsub.f32 %v919, %v920
    %v922 = vand.u32 %v921, 4294901760
    %923 = vmatpush1.msra.mxu0 %v922
    %924 = vmatprep.subr.mxu0 0.0
    %v925 = vand.u32 %v794, 4294901760
    %v926 = vsub.f32 %v794, %v925
    %v927 = vand.u32 %v926, 4294901760
    %v928 = vsub.f32 %v926, %v927
    %v929 = vand.u32 %v928, 4294901760
    %930 = vmatpush1.msra.mxu0 %v929
    %931 = vmatprep.subr.mxu0 0.0
    %v932 = vand.u32 %v795, 4294901760
    %v933 = vsub.f32 %v795, %v932
    %v934 = vand.u32 %v933, 4294901760
    %v935 = vsub.f32 %v933, %v934
    %v936 = vand.u32 %v935, 4294901760
    %937 = vmatpush1.msra.mxu0 %v936
    %938 = vmatprep.subr.mxu0 0.0
    %v939 = vand.u32 %v796, 4294901760
    %v940 = vsub.f32 %v796, %v939
    %v941 = vand.u32 %v940, 4294901760
    %v942 = vsub.f32 %v940, %v941
    %v943 = vand.u32 %v942, 4294901760
    %944 = vmatpush1.msra.mxu0 %v943
    %945 = vmatprep.subr.mxu0 0.0
    %v946 = vand.u32 %v797, 4294901760
    %v947 = vsub.f32 %v797, %v946
    %v948 = vand.u32 %v947, 4294901760
    %v949 = vsub.f32 %v947, %v948
    %v950 = vand.u32 %v949, 4294901760
    %951 = vmatpush1.msra.mxu0 %v950
    %952 = vmatprep.subr.mxu0 0.0
    %v953 = vand.u32 %v798, 4294901760
    %v954 = vsub.f32 %v798, %v953
    %v955 = vand.u32 %v954, 4294901760
    %v956 = vsub.f32 %v954, %v955
    %v957 = vand.u32 %v956, 4294901760
    %958 = vmatpush1.msra.mxu0 %v957
    %959 = vmatprep.subr.mxu0 0.0
    %v960 = vand.u32 %v799, 4294901760
    %v961 = vsub.f32 %v799, %v960
    %v962 = vand.u32 %v961, 4294901760
    %v963 = vsub.f32 %v961, %v962
    %v964 = vand.u32 %v963, 4294901760
    %965 = vmatpush1.msra.mxu0 %v964
    %966 = vmatprep.subr.mxu0 0.0
    %v967 = vand.u32 %v800, 4294901760
    %v968 = vsub.f32 %v800, %v967
    %v969 = vand.u32 %v968, 4294901760
    %v970 = vsub.f32 %v968, %v969
    %v971 = vand.u32 %v970, 4294901760
    %972 = vmatpush1.msra.mxu0 %v971
    %973 = vmatprep.subr.mxu0 0.0
    %v974 = vand.u32 %v801, 4294901760
    %v975 = vsub.f32 %v801, %v974
    %v976 = vand.u32 %v975, 4294901760
    %v977 = vsub.f32 %v975, %v976
    %v978 = vand.u32 %v977, 4294901760
    %979 = vmatpush1.msra.mxu0 %v978
    %980 = vmatprep.subr.mxu0 0.0
    %v981 = vand.u32 %v802, 4294901760
    %v982 = vsub.f32 %v802, %v981
    %v983 = vand.u32 %v982, 4294901760
    %v984 = vsub.f32 %v982, %v983
    %v985 = vand.u32 %v984, 4294901760
    %986 = vmatpush1.msra.mxu0 %v985
    %987 = vmatprep.subr.mxu0 0.0
    %v988 = vand.u32 %v803, 4294901760
    %v989 = vsub.f32 %v803, %v988
    %v990 = vand.u32 %v989, 4294901760
    %v991 = vsub.f32 %v989, %v990
    %v992 = vand.u32 %v991, 4294901760
    %993 = vmatpush1.msra.mxu0 %v992
    %994 = vmatprep.subr.mxu0 0.0
    %v995 = vand.u32 %v804, 4294901760
    %v996 = vsub.f32 %v804, %v995
    %v997 = vand.u32 %v996, 4294901760
    %v998 = vsub.f32 %v996, %v997
    %v999 = vand.u32 %v998, 4294901760
    %1000 = vmatpush1.msra.mxu0 %v999
    %1001 = vmatprep.subr.mxu0 0.0
    %v1002 = vand.u32 %v805, 4294901760
    %v1003 = vsub.f32 %v805, %v1002
    %v1004 = vand.u32 %v1003, 4294901760
    %v1005 = vsub.f32 %v1003, %v1004
    %v1006 = vand.u32 %v1005, 4294901760
    %1007 = vmatpush1.msra.mxu0 %v1006
    %1008 = vmatprep.subr.mxu0 0.0
    %v1009 = vand.u32 %v806, 4294901760
    %v1010 = vsub.f32 %v806, %v1009
    %v1011 = vand.u32 %v1010, 4294901760
    %v1012 = vsub.f32 %v1010, %v1011
    %v1013 = vand.u32 %v1012, 4294901760
    %1014 = vmatpush1.msra.mxu0 %v1013
    %1015 = vmatprep.subr.mxu0 0.0
    %v1016 = vand.u32 %v807, 4294901760
    %v1017 = vsub.f32 %v807, %v1016
    %v1018 = vand.u32 %v1017, 4294901760
    %v1019 = vsub.f32 %v1017, %v1018
    %v1020 = vand.u32 %v1019, 4294901760
    %1021 = vmatpush1.msra.mxu0 %v1020
    %1022 = vmatprep.subr.mxu0 0.0
    %v1023 = vand.u32 %v808, 4294901760
    %v1024 = vsub.f32 %v808, %v1023
    %v1025 = vand.u32 %v1024, 4294901760
    %v1026 = vsub.f32 %v1024, %v1025
    %v1027 = vand.u32 %v1026, 4294901760
    %1028 = vmatpush1.msra.mxu0 %v1027
    %1029 = vmatprep.subr.mxu0 0.0
    %1030 = vmatpush1.msra.mxu0 0.0
    %1031 = vmatprep.subr.mxu0 0.0
    %1032 = vmatpush1.msra.mxu0 0.0
    %1033 = vmatprep.subr.mxu0 0.0
    %1034 = vmatpush1.msra.mxu0 0.0
    %1035 = vmatprep.subr.mxu0 0.0
    %1036 = vmatpush1.msra.mxu0 0.0
    %1037 = vmatprep.subr.mxu0 0.0
    %1038 = vmatpush1.msra.mxu0 0.0
    %1039 = vmatprep.subr.mxu0 0.0
    %1040 = vmatpush1.msra.mxu0 0.0
    %1041 = vmatprep.subr.mxu0 0.0
    %1042 = vmatpush1.msra.mxu0 0.0
    %1043 = vmatprep.subr.mxu0 0.0
    %1044 = vmatpush1.msra.mxu0 0.0
    %1045 = vmatprep.subr.mxu0 0.0
    %1046 = vmatpush1.msra.mxu0 0.0
    %1047 = vmatprep.subr.mxu0 0.0
    %1048 = vmatpush1.msra.mxu0 0.0
    %1049 = vmatprep.subr.mxu0 0.0
    %1050 = vmatpush1.msra.mxu0 0.0
    %1051 = vmatprep.subr.mxu0 0.0
    %1052 = vmatpush1.msra.mxu0 0.0
    %1053 = vmatprep.subr.mxu0 0.0
    %1054 = vmatpush1.msra.mxu0 0.0
    %1055 = vmatprep.subr.mxu0 0.0
    %1056 = vmatpush1.msra.mxu0 0.0
    %1057 = vmatprep.subr.mxu0 0.0
    %1058 = vmatpush1.msra.mxu0 0.0
    %1059 = vmatprep.subr.mxu0 0.0
    %1060 = vmatpush1.msra.mxu0 0.0
    %1061 = vmatprep.mubr.f32.mxu0 0.0
    %v1062 = vand.u32 %v791, 4294901760
    %1063 = vmatmul.mubr.f32.gmra.mrb[0].mxu0 %v1062
    %v1064 = vpop.f32.mrb[0].mxu0
    %v1065 = vadd.f32 %v904, %v1064
    %v1066 = vpop.f32.mrb[0].mxu0
    %1067 = vmatprep.mubr.f32.mxu0 0.0
    %v1068 = vand.u32 %v792, 4294901760
    %1069 = vmatmul.mubr.f32.gmra.mrb[0].mxu0 %v1068
    %v1070 = vpop.f32.mrb[0].mxu0
    %v1071 = vadd.f32 %v914, %v1070
    %v1072 = vpop.f32.mrb[0].mxu0
    %1073 = vdwg.mxu0
    %1074 = vmatprep.subr.mxu0 0.0
    %v1075 = vand.u32 %v793, 4294901760
    %v1076 = vsub.f32 %v793, %v1075
    %1077 = vmatpush1.msra.mxu0 %v1076
    %1078 = vmatprep.subr.mxu0 0.0
    %v1079 = vand.u32 %v794, 4294901760
    %v1080 = vsub.f32 %v794, %v1079
    %1081 = vmatpush1.msra.mxu0 %v1080
    %1082 = vmatprep.subr.mxu0 0.0
    %v1083 = vand.u32 %v795, 4294901760
    %v1084 = vsub.f32 %v795, %v1083
    %1085 = vmatpush1.msra.mxu0 %v1084
    %1086 = vmatprep.subr.mxu0 0.0
    %v1087 = vand.u32 %v796, 4294901760
    %v1088 = vsub.f32 %v796, %v1087
    %1089 = vmatpush1.msra.mxu0 %v1088
    %1090 = vmatprep.subr.mxu0 0.0
    %v1091 = vand.u32 %v797, 4294901760
    %v1092 = vsub.f32 %v797, %v1091
    %1093 = vmatpush1.msra.mxu0 %v1092
    %1094 = vmatprep.subr.mxu0 0.0
    %v1095 = vand.u32 %v798, 4294901760
    %v1096 = vsub.f32 %v798, %v1095
    %1097 = vmatpush1.msra.mxu0 %v1096
    %1098 = vmatprep.subr.mxu0 0.0
    %v1099 = vand.u32 %v799, 4294901760
    %v1100 = vsub.f32 %v799, %v1099
    %1101 = vmatpush1.msra.mxu0 %v1100
    %1102 = vmatprep.subr.mxu0 0.0
    %v1103 = vand.u32 %v800, 4294901760
    %v1104 = vsub.f32 %v800, %v1103
    %1105 = vmatpush1.msra.mxu0 %v1104
    %1106 = vmatprep.subr.mxu0 0.0
    %v1107 = vand.u32 %v801, 4294901760
    %v1108 = vsub.f32 %v801, %v1107
    %1109 = vmatpush1.msra.mxu0 %v1108
    %1110 = vmatprep.subr.mxu0 0.0
    %v1111 = vand.u32 %v802, 4294901760
    %v1112 = vsub.f32 %v802, %v1111
    %1113 = vmatpush1.msra.mxu0 %v1112
    %1114 = vmatprep.subr.mxu0 0.0
    %v1115 = vand.u32 %v803, 4294901760
    %v1116 = vsub.f32 %v803, %v1115
    %1117 = vmatpush1.msra.mxu0 %v1116
    %1118 = vmatprep.subr.mxu0 0.0
    %v1119 = vand.u32 %v804, 4294901760
    %v1120 = vsub.f32 %v804, %v1119
    %1121 = vmatpush1.msra.mxu0 %v1120
    %1122 = vmatprep.subr.mxu0 0.0
    %v1123 = vand.u32 %v805, 4294901760
    %v1124 = vsub.f32 %v805, %v1123
    %1125 = vmatpush1.msra.mxu0 %v1124
    %1126 = vmatprep.subr.mxu0 0.0
    %v1127 = vand.u32 %v806, 4294901760
    %v1128 = vsub.f32 %v806, %v1127
    %1129 = vmatpush1.msra.mxu0 %v1128
    %1130 = vmatprep.subr.mxu0 0.0
    %v1131 = vand.u32 %v807, 4294901760
    %v1132 = vsub.f32 %v807, %v1131
    %1133 = vmatpush1.msra.mxu0 %v1132
    %1134 = vmatprep.subr.mxu0 0.0
    %v1135 = vand.u32 %v808, 4294901760
    %v1136 = vsub.f32 %v808, %v1135
    %1137 = vmatpush1.msra.mxu0 %v1136
    %1138 = vmatprep.subr.mxu0 0.0
    %1139 = vmatpush1.msra.mxu0 0.0
    %1140 = vmatprep.subr.mxu0 0.0
    %1141 = vmatpush1.msra.mxu0 0.0
    %1142 = vmatprep.subr.mxu0 0.0
    %1143 = vmatpush1.msra.mxu0 0.0
    %1144 = vmatprep.subr.mxu0 0.0
    %1145 = vmatpush1.msra.mxu0 0.0
    %1146 = vmatprep.subr.mxu0 0.0
    %1147 = vmatpush1.msra.mxu0 0.0
    %1148 = vmatprep.subr.mxu0 0.0
    %1149 = vmatpush1.msra.mxu0 0.0
    %1150 = vmatprep.subr.mxu0 0.0
    %1151 = vmatpush1.msra.mxu0 0.0
    %1152 = vmatprep.subr.mxu0 0.0
    %1153 = vmatpush1.msra.mxu0 0.0
    %1154 = vmatprep.subr.mxu0 0.0
    %1155 = vmatpush1.msra.mxu0 0.0
    %1156 = vmatprep.subr.mxu0 0.0
    %1157 = vmatpush1.msra.mxu0 0.0
    %1158 = vmatprep.subr.mxu0 0.0
    %1159 = vmatpush1.msra.mxu0 0.0
    %1160 = vmatprep.subr.mxu0 0.0
    %1161 = vmatpush1.msra.mxu0 0.0
    %1162 = vmatprep.subr.mxu0 0.0
    %1163 = vmatpush1.msra.mxu0 0.0
    %1164 = vmatprep.subr.mxu0 0.0
    %1165 = vmatpush1.msra.mxu0 0.0
    %1166 = vmatprep.subr.mxu0 0.0
    %1167 = vmatpush1.msra.mxu0 0.0
    %1168 = vmatprep.subr.mxu0 0.0
    %1169 = vmatpush1.msra.mxu0 0.0
    %1170 = vmatprep.mubr.f32.mxu0 0.0
    %v1171 = vand.u32 %v791, 4294901760
    %v1172 = vsub.f32 %v791, %v1171
    %1173 = vmatmul.mubr.f32.gmra.mrb[0].mxu0 %v1172
    %v1174 = vpop.f32.mrb[0].mxu0
    %v1175 = vadd.f32 %v1065, %v1174
    %v1176 = vpop.f32.mrb[0].mxu0
    %1177 = vmatprep.mubr.f32.mxu0 0.0
    %v1178 = vand.u32 %v792, 4294901760
    %v1179 = vsub.f32 %v792, %v1178
    %1180 = vmatmul.mubr.f32.gmra.mrb[0].mxu0 %v1179
    %v1181 = vpop.f32.mrb[0].mxu0
    %v1182 = vadd.f32 %v1071, %v1181
    %v1183 = vpop.f32.mrb[0].mxu0
    %1184 = vdwg.mxu0
    %1185 = vmatprep.subr.mxu0 0.0
    %v1186 = vand.u32 %v793, 4294901760
    %1187 = vmatpush1.msra.mxu0 %v1186
    %1188 = vmatprep.subr.mxu0 0.0
    %v1189 = vand.u32 %v794, 4294901760
    %1190 = vmatpush1.msra.mxu0 %v1189
    %1191 = vmatprep.subr.mxu0 0.0
    %v1192 = vand.u32 %v795, 4294901760
    %1193 = vmatpush1.msra.mxu0 %v1192
    %1194 = vmatprep.subr.mxu0 0.0
    %v1195 = vand.u32 %v796, 4294901760
    %1196 = vmatpush1.msra.mxu0 %v1195
    %1197 = vmatprep.subr.mxu0 0.0
    %v1198 = vand.u32 %v797, 4294901760
    %1199 = vmatpush1.msra.mxu0 %v1198
    %1200 = vmatprep.subr.mxu0 0.0
    %v1201 = vand.u32 %v798, 4294901760
    %1202 = vmatpush1.msra.mxu0 %v1201
    %1203 = vmatprep.subr.mxu0 0.0
    %v1204 = vand.u32 %v799, 4294901760
    %1205 = vmatpush1.msra.mxu0 %v1204
    %1206 = vmatprep.subr.mxu0 0.0
    %v1207 = vand.u32 %v800, 4294901760
    %1208 = vmatpush1.msra.mxu0 %v1207
    %1209 = vmatprep.subr.mxu0 0.0
    %v1210 = vand.u32 %v801, 4294901760
    %1211 = vmatpush1.msra.mxu0 %v1210
    %1212 = vmatprep.subr.mxu0 0.0
    %v1213 = vand.u32 %v802, 4294901760
    %1214 = vmatpush1.msra.mxu0 %v1213
    %1215 = vmatprep.subr.mxu0 0.0
    %v1216 = vand.u32 %v803, 4294901760
    %1217 = vmatpush1.msra.mxu0 %v1216
    %1218 = vmatprep.subr.mxu0 0.0
    %v1219 = vand.u32 %v804, 4294901760
    %1220 = vmatpush1.msra.mxu0 %v1219
    %1221 = vmatprep.subr.mxu0 0.0
    %v1222 = vand.u32 %v805, 4294901760
    %1223 = vmatpush1.msra.mxu0 %v1222
    %1224 = vmatprep.subr.mxu0 0.0
    %v1225 = vand.u32 %v806, 4294901760
    %1226 = vmatpush1.msra.mxu0 %v1225
    %1227 = vmatprep.subr.mxu0 0.0
    %v1228 = vand.u32 %v807, 4294901760
    %1229 = vmatpush1.msra.mxu0 %v1228
    %1230 = vmatprep.subr.mxu0 0.0
    %v1231 = vand.u32 %v808, 4294901760
    %1232 = vmatpush1.msra.mxu0 %v1231
    %1233 = vmatprep.subr.mxu0 0.0
    %1234 = vmatpush1.msra.mxu0 0.0
    %1235 = vmatprep.subr.mxu0 0.0
    %1236 = vmatpush1.msra.mxu0 0.0
    %1237 = vmatprep.subr.mxu0 0.0
    %1238 = vmatpush1.msra.mxu0 0.0
    %1239 = vmatprep.subr.mxu0 0.0
    %1240 = vmatpush1.msra.mxu0 0.0
    %1241 = vmatprep.subr.mxu0 0.0
    %1242 = vmatpush1.msra.mxu0 0.0
    %1243 = vmatprep.subr.mxu0 0.0
    %1244 = vmatpush1.msra.mxu0 0.0
    %1245 = vmatprep.subr.mxu0 0.0
    %1246 = vmatpush1.msra.mxu0 0.0
    %1247 = vmatprep.subr.mxu0 0.0
    %1248 = vmatpush1.msra.mxu0 0.0
    %1249 = vmatprep.subr.mxu0 0.0
    %1250 = vmatpush1.msra.mxu0 0.0
    %1251 = vmatprep.subr.mxu0 0.0
    %1252 = vmatpush1.msra.mxu0 0.0
    %1253 = vmatprep.subr.mxu0 0.0
    %1254 = vmatpush1.msra.mxu0 0.0
    %1255 = vmatprep.subr.mxu0 0.0
    %1256 = vmatpush1.msra.mxu0 0.0
    %1257 = vmatprep.subr.mxu0 0.0
    %1258 = vmatpush1.msra.mxu0 0.0
    %1259 = vmatprep.subr.mxu0 0.0
    %1260 = vmatpush1.msra.mxu0 0.0
    %1261 = vmatprep.subr.mxu0 0.0
    %1262 = vmatpush1.msra.mxu0 0.0
    %1263 = vmatprep.subr.mxu0 0.0
    %1264 = vmatpush1.msra.mxu0 0.0
    %1265 = vmatprep.mubr.f32.mxu0 0.0
    %v1266 = vand.u32 %v791, 4294901760
    %v1267 = vsub.f32 %v791, %v1266
    %v1268 = vand.u32 %v1267, 4294901760
    %1269 = vmatmul.mubr.f32.gmra.mrb[0].mxu0 %v1268
    %v1270 = vpop.f32.mrb[0].mxu0
    %v1271 = vadd.f32 %v1175, %v1270
    %v1272 = vpop.f32.mrb[0].mxu0
    %1273 = vmatprep.mubr.f32.mxu0 0.0
    %v1274 = vand.u32 %v792, 4294901760
    %v1275 = vsub.f32 %v792, %v1274
    %v1276 = vand.u32 %v1275, 4294901760
    %1277 = vmatmul.mubr.f32.gmra.mrb[0].mxu0 %v1276
    %v1278 = vpop.f32.mrb[0].mxu0
    %v1279 = vadd.f32 %v1182, %v1278
    %v1280 = vpop.f32.mrb[0].mxu0
    %1281 = vdwg.mxu0
    %1282 = vmatprep.subr.mxu0 0.0
    %v1283 = vand.u32 %v793, 4294901760
    %v1284 = vsub.f32 %v793, %v1283
    %v1285 = vand.u32 %v1284, 4294901760
    %1286 = vmatpush1.msra.mxu0 %v1285
    %1287 = vmatprep.subr.mxu0 0.0
    %v1288 = vand.u32 %v794, 4294901760
    %v1289 = vsub.f32 %v794, %v1288
    %v1290 = vand.u32 %v1289, 4294901760
    %1291 = vmatpush1.msra.mxu0 %v1290
    %1292 = vmatprep.subr.mxu0 0.0
    %v1293 = vand.u32 %v795, 4294901760
    %v1294 = vsub.f32 %v795, %v1293
    %v1295 = vand.u32 %v1294, 4294901760
    %1296 = vmatpush1.msra.mxu0 %v1295
    %1297 = vmatprep.subr.mxu0 0.0
    %v1298 = vand.u32 %v796, 4294901760
    %v1299 = vsub.f32 %v796, %v1298
    %v1300 = vand.u32 %v1299, 4294901760
    %1301 = vmatpush1.msra.mxu0 %v1300
    %1302 = vmatprep.subr.mxu0 0.0
    %v1303 = vand.u32 %v797, 4294901760
    %v1304 = vsub.f32 %v797, %v1303
    %v1305 = vand.u32 %v1304, 4294901760
    %1306 = vmatpush1.msra.mxu0 %v1305
    %1307 = vmatprep.subr.mxu0 0.0
    %v1308 = vand.u32 %v798, 4294901760
    %v1309 = vsub.f32 %v798, %v1308
    %v1310 = vand.u32 %v1309, 4294901760
    %1311 = vmatpush1.msra.mxu0 %v1310
    %1312 = vmatprep.subr.mxu0 0.0
    %v1313 = vand.u32 %v799, 4294901760
    %v1314 = vsub.f32 %v799, %v1313
    %v1315 = vand.u32 %v1314, 4294901760
    %1316 = vmatpush1.msra.mxu0 %v1315
    %1317 = vmatprep.subr.mxu0 0.0
    %v1318 = vand.u32 %v800, 4294901760
    %v1319 = vsub.f32 %v800, %v1318
    %v1320 = vand.u32 %v1319, 4294901760
    %1321 = vmatpush1.msra.mxu0 %v1320
    %1322 = vmatprep.subr.mxu0 0.0
    %v1323 = vand.u32 %v801, 4294901760
    %v1324 = vsub.f32 %v801, %v1323
    %v1325 = vand.u32 %v1324, 4294901760
    %1326 = vmatpush1.msra.mxu0 %v1325
    %1327 = vmatprep.subr.mxu0 0.0
    %v1328 = vand.u32 %v802, 4294901760
    %v1329 = vsub.f32 %v802, %v1328
    %v1330 = vand.u32 %v1329, 4294901760
    %1331 = vmatpush1.msra.mxu0 %v1330
    %1332 = vmatprep.subr.mxu0 0.0
    %v1333 = vand.u32 %v803, 4294901760
    %v1334 = vsub.f32 %v803, %v1333
    %v1335 = vand.u32 %v1334, 4294901760
    %1336 = vmatpush1.msra.mxu0 %v1335
    %1337 = vmatprep.subr.mxu0 0.0
    %v1338 = vand.u32 %v804, 4294901760
    %v1339 = vsub.f32 %v804, %v1338
    %v1340 = vand.u32 %v1339, 4294901760
    %1341 = vmatpush1.msra.mxu0 %v1340
    %1342 = vmatprep.subr.mxu0 0.0
    %v1343 = vand.u32 %v805, 4294901760
    %v1344 = vsub.f32 %v805, %v1343
    %v1345 = vand.u32 %v1344, 4294901760
    %1346 = vmatpush1.msra.mxu0 %v1345
    %1347 = vmatprep.subr.mxu0 0.0
    %v1348 = vand.u32 %v806, 4294901760
    %v1349 = vsub.f32 %v806, %v1348
    %v1350 = vand.u32 %v1349, 4294901760
    %1351 = vmatpush1.msra.mxu0 %v1350
    %1352 = vmatprep.subr.mxu0 0.0
    %v1353 = vand.u32 %v807, 4294901760
    %v1354 = vsub.f32 %v807, %v1353
    %v1355 = vand.u32 %v1354, 4294901760
    %1356 = vmatpush1.msra.mxu0 %v1355
    %1357 = vmatprep.subr.mxu0 0.0
    %v1358 = vand.u32 %v808, 4294901760
    %v1359 = vsub.f32 %v808, %v1358
    %v1360 = vand.u32 %v1359, 4294901760
    %1361 = vmatpush1.msra.mxu0 %v1360
    %1362 = vmatprep.subr.mxu0 0.0
    %1363 = vmatpush1.msra.mxu0 0.0
    %1364 = vmatprep.subr.mxu0 0.0
    %1365 = vmatpush1.msra.mxu0 0.0
    %1366 = vmatprep.subr.mxu0 0.0
    %1367 = vmatpush1.msra.mxu0 0.0
    %1368 = vmatprep.subr.mxu0 0.0
    %1369 = vmatpush1.msra.mxu0 0.0
    %1370 = vmatprep.subr.mxu0 0.0
    %1371 = vmatpush1.msra.mxu0 0.0
    %1372 = vmatprep.subr.mxu0 0.0
    %1373 = vmatpush1.msra.mxu0 0.0
    %1374 = vmatprep.subr.mxu0 0.0
    %1375 = vmatpush1.msra.mxu0 0.0
    %1376 = vmatprep.subr.mxu0 0.0
    %1377 = vmatpush1.msra.mxu0 0.0
    %1378 = vmatprep.subr.mxu0 0.0
    %1379 = vmatpush1.msra.mxu0 0.0
    %1380 = vmatprep.subr.mxu0 0.0
    %1381 = vmatpush1.msra.mxu0 0.0
    %1382 = vmatprep.subr.mxu0 0.0
    %1383 = vmatpush1.msra.mxu0 0.0
    %1384 = vmatprep.subr.mxu0 0.0
    %1385 = vmatpush1.msra.mxu0 0.0
    %1386 = vmatprep.subr.mxu0 0.0
    %1387 = vmatpush1.msra.mxu0 0.0
    %1388 = vmatprep.subr.mxu0 0.0
    %1389 = vmatpush1.msra.mxu0 0.0
    %1390 = vmatprep.subr.mxu0 0.0
    %1391 = vmatpush1.msra.mxu0 0.0
    %1392 = vmatprep.subr.mxu0 0.0
    %1393 = vmatpush1.msra.mxu0 0.0
    %1394 = vmatprep.mubr.f32.mxu0 0.0
    %v1395 = vand.u32 %v791, 4294901760
    %1396 = vmatmul.mubr.f32.gmra.mrb[0].mxu0 %v1395
    %v1397 = vpop.f32.mrb[0].mxu0
    %v1398 = vadd.f32 %v1271, %v1397
    %v1399 = vpop.f32.mrb[0].mxu0
    %1400 = vmatprep.mubr.f32.mxu0 0.0
    %v1401 = vand.u32 %v792, 4294901760
    %1402 = vmatmul.mubr.f32.gmra.mrb[0].mxu0 %v1401
    %v1403 = vpop.f32.mrb[0].mxu0
    %v1404 = vadd.f32 %v1279, %v1403
    %v1405 = vpop.f32.mrb[0].mxu0
    %1406 = vdwg.mxu0
    %1407 = vmatprep.subr.mxu0 0.0
    %v1408 = vand.u32 %v793, 4294901760
    %1409 = vmatpush1.msra.mxu0 %v1408
    %1410 = vmatprep.subr.mxu0 0.0
    %v1411 = vand.u32 %v794, 4294901760
    %1412 = vmatpush1.msra.mxu0 %v1411
    %1413 = vmatprep.subr.mxu0 0.0
    %v1414 = vand.u32 %v795, 4294901760
    %1415 = vmatpush1.msra.mxu0 %v1414
    %1416 = vmatprep.subr.mxu0 0.0
    %v1417 = vand.u32 %v796, 4294901760
    %1418 = vmatpush1.msra.mxu0 %v1417
    %1419 = vmatprep.subr.mxu0 0.0
    %v1420 = vand.u32 %v797, 4294901760
    %1421 = vmatpush1.msra.mxu0 %v1420
    %1422 = vmatprep.subr.mxu0 0.0
    %v1423 = vand.u32 %v798, 4294901760
    %1424 = vmatpush1.msra.mxu0 %v1423
    %1425 = vmatprep.subr.mxu0 0.0
    %v1426 = vand.u32 %v799, 4294901760
    %1427 = vmatpush1.msra.mxu0 %v1426
    %1428 = vmatprep.subr.mxu0 0.0
    %v1429 = vand.u32 %v800, 4294901760
    %1430 = vmatpush1.msra.mxu0 %v1429
    %1431 = vmatprep.subr.mxu0 0.0
    %v1432 = vand.u32 %v801, 4294901760
    %1433 = vmatpush1.msra.mxu0 %v1432
    %1434 = vmatprep.subr.mxu0 0.0
    %v1435 = vand.u32 %v802, 4294901760
    %1436 = vmatpush1.msra.mxu0 %v1435
    %1437 = vmatprep.subr.mxu0 0.0
    %v1438 = vand.u32 %v803, 4294901760
    %1439 = vmatpush1.msra.mxu0 %v1438
    %1440 = vmatprep.subr.mxu0 0.0
    %v1441 = vand.u32 %v804, 4294901760
    %1442 = vmatpush1.msra.mxu0 %v1441
    %1443 = vmatprep.subr.mxu0 0.0
    %v1444 = vand.u32 %v805, 4294901760
    %1445 = vmatpush1.msra.mxu0 %v1444
    %1446 = vmatprep.subr.mxu0 0.0
    %v1447 = vand.u32 %v806, 4294901760
    %1448 = vmatpush1.msra.mxu0 %v1447
    %1449 = vmatprep.subr.mxu0 0.0
    %v1450 = vand.u32 %v807, 4294901760
    %1451 = vmatpush1.msra.mxu0 %v1450
    %1452 = vmatprep.subr.mxu0 0.0
    %v1453 = vand.u32 %v808, 4294901760
    %1454 = vmatpush1.msra.mxu0 %v1453
    %1455 = vmatprep.subr.mxu0 0.0
    %1456 = vmatpush1.msra.mxu0 0.0
    %1457 = vmatprep.subr.mxu0 0.0
    %1458 = vmatpush1.msra.mxu0 0.0
    %1459 = vmatprep.subr.mxu0 0.0
    %1460 = vmatpush1.msra.mxu0 0.0
    %1461 = vmatprep.subr.mxu0 0.0
    %1462 = vmatpush1.msra.mxu0 0.0
    %1463 = vmatprep.subr.mxu0 0.0
    %1464 = vmatpush1.msra.mxu0 0.0
    %1465 = vmatprep.subr.mxu0 0.0
    %1466 = vmatpush1.msra.mxu0 0.0
    %1467 = vmatprep.subr.mxu0 0.0
    %1468 = vmatpush1.msra.mxu0 0.0
    %1469 = vmatprep.subr.mxu0 0.0
    %1470 = vmatpush1.msra.mxu0 0.0
    %1471 = vmatprep.subr.mxu0 0.0
    %1472 = vmatpush1.msra.mxu0 0.0
    %1473 = vmatprep.subr.mxu0 0.0
    %1474 = vmatpush1.msra.mxu0 0.0
    %1475 = vmatprep.subr.mxu0 0.0
    %1476 = vmatpush1.msra.mxu0 0.0
    %1477 = vmatprep.subr.mxu0 0.0
    %1478 = vmatpush1.msra.mxu0 0.0
    %1479 = vmatprep.subr.mxu0 0.0
    %1480 = vmatpush1.msra.mxu0 0.0
    %1481 = vmatprep.subr.mxu0 0.0
    %1482 = vmatpush1.msra.mxu0 0.0
    %1483 = vmatprep.subr.mxu0 0.0
    %1484 = vmatpush1.msra.mxu0 0.0
    %1485 = vmatprep.subr.mxu0 0.0
    %1486 = vmatpush1.msra.mxu0 0.0
    %1487 = vmatprep.mubr.f32.mxu0 0.0
    %v1488 = vand.u32 %v791, 4294901760
    %1489 = vmatmul.mubr.f32.gmra.mrb[0].mxu0 %v1488
    %v1490 = vpop.f32.mrb[0].mxu0
    %v1491 = vadd.f32 %v1398, %v1490
    %v1492 = vpop.f32.mrb[0].mxu0
    %1493 = vmatprep.mubr.f32.mxu0 0.0
    %v1494 = vand.u32 %v792, 4294901760
    %1495 = vmatmul.mubr.f32.gmra.mrb[0].mxu0 %v1494
    %v1496 = vpop.f32.mrb[0].mxu0
    %v1497 = vadd.f32 %v1404, %v1496
    %v1498 = vpop.f32.mrb[0].mxu0
    %1499 = vdwg.mxu0
    %v1500 = vmax.f32 %v1491, 0.0
    %v1501 = vmax.f32 %v1497, 0.0
    %v1502 = vld [vmem:[#allocation8] sm:$0xff]
    %v1503 = vld [vmem:[#allocation8 + $0x8] sm:$0xff]
    %v1504 = vld [vmem:[#allocation8 + $0x10] sm:$0xff]
    %v1505 = vld [vmem:[#allocation8 + $0x18] sm:$0xff]
    %v1506 = vld [vmem:[#allocation8 + $0x20] sm:$0xff]
    %v1507 = vld [vmem:[#allocation8 + $0x28] sm:$0xff]
    %v1508 = vld [vmem:[#allocation8 + $0x30] sm:$0xff]
    %v1509 = vld [vmem:[#allocation8 + $0x38] sm:$0xff]
    %v1510 = vld [vmem:[#allocation8 + $0x40] sm:$0xff]
    %v1511 = vld [vmem:[#allocation8 + $0x48] sm:$0xff]
    %v1512 = vld [vmem:[#allocation8 + $0x50] sm:$0xff]
    %v1513 = vld [vmem:[#allocation8 + $0x58] sm:$0xff]
    %v1514 = vld [vmem:[#allocation8 + $0x60] sm:$0xff]
    %v1515 = vld [vmem:[#allocation8 + $0x68] sm:$0xff]
    %v1516 = vld [vmem:[#allocation8 + $0x70] sm:$0xff]
    %v1517 = vld [vmem:[#allocation8 + $0x78] sm:$0xff]
    %v1518 = vld [vmem:[%s6] sm:$0x1]
    %v1520 = vlaneseq
    %v1521 = vshrl.u32 %v1520, 7
    %v1522 = vsub.s32 0, %v1521
    %v1523 = vrot.slane %v1518, %v1522
    %1525 = vmatprep.subr.mxu0 0.0
    %v1526 = vand.u32 %v1502, 4294901760
    %1527 = vmatpush1.msra.mxu0 %v1526
    %1528 = vmatprep.subr.mxu0 0.0
    %v1529 = vand.u32 %v1503, 4294901760
    %1530 = vmatpush1.msra.mxu0 %v1529
    %1531 = vmatprep.subr.mxu0 0.0
    %v1532 = vand.u32 %v1504, 4294901760
    %1533 = vmatpush1.msra.mxu0 %v1532
    %1534 = vmatprep.subr.mxu0 0.0
    %v1535 = vand.u32 %v1505, 4294901760
    %1536 = vmatpush1.msra.mxu0 %v1535
    %1537 = vmatprep.subr.mxu0 0.0
    %v1538 = vand.u32 %v1506, 4294901760
    %1539 = vmatpush1.msra.mxu0 %v1538
    %1540 = vmatprep.subr.mxu0 0.0
    %v1541 = vand.u32 %v1507, 4294901760
    %1542 = vmatpush1.msra.mxu0 %v1541
    %1543 = vmatprep.subr.mxu0 0.0
    %v1544 = vand.u32 %v1508, 4294901760
    %1545 = vmatpush1.msra.mxu0 %v1544
    %1546 = vmatprep.subr.mxu0 0.0
    %v1547 = vand.u32 %v1509, 4294901760
    %1548 = vmatpush1.msra.mxu0 %v1547
    %1549 = vmatprep.subr.mxu0 0.0
    %v1550 = vand.u32 %v1510, 4294901760
    %1551 = vmatpush1.msra.mxu0 %v1550
    %1552 = vmatprep.subr.mxu0 0.0
    %v1553 = vand.u32 %v1511, 4294901760
    %1554 = vmatpush1.msra.mxu0 %v1553
    %1555 = vmatprep.subr.mxu0 0.0
    %v1556 = vand.u32 %v1512, 4294901760
    %1557 = vmatpush1.msra.mxu0 %v1556
    %1558 = vmatprep.subr.mxu0 0.0
    %v1559 = vand.u32 %v1513, 4294901760
    %1560 = vmatpush1.msra.mxu0 %v1559
    %1561 = vmatprep.subr.mxu0 0.0
    %v1562 = vand.u32 %v1514, 4294901760
    %1563 = vmatpush1.msra.mxu0 %v1562
    %1564 = vmatprep.subr.mxu0 0.0
    %v1565 = vand.u32 %v1515, 4294901760
    %1566 = vmatpush1.msra.mxu0 %v1565
    %1567 = vmatprep.subr.mxu0 0.0
    %v1568 = vand.u32 %v1516, 4294901760
    %1569 = vmatpush1.msra.mxu0 %v1568
    %1570 = vmatprep.subr.mxu0 0.0
    %v1571 = vand.u32 %v1517, 4294901760
    %1572 = vmatpush1.msra.mxu0 %v1571
    %1573 = vmatprep.subr.mxu0 0.0
    %1574 = vmatpush1.msra.mxu0 0.0
    %1575 = vmatprep.subr.mxu0 0.0
    %1576 = vmatpush1.msra.mxu0 0.0
    %1577 = vmatprep.subr.mxu0 0.0
    %1578 = vmatpush1.msra.mxu0 0.0
    %1579 = vmatprep.subr.mxu0 0.0
    %1580 = vmatpush1.msra.mxu0 0.0
    %1581 = vmatprep.subr.mxu0 0.0
    %1582 = vmatpush1.msra.mxu0 0.0
    %1583 = vmatprep.subr.mxu0 0.0
    %1584 = vmatpush1.msra.mxu0 0.0
    %1585 = vmatprep.subr.mxu0 0.0
    %1586 = vmatpush1.msra.mxu0 0.0
    %1587 = vmatprep.subr.mxu0 0.0
    %1588 = vmatpush1.msra.mxu0 0.0
    %1589 = vmatprep.subr.mxu0 0.0
    %1590 = vmatpush1.msra.mxu0 0.0
    %1591 = vmatprep.subr.mxu0 0.0
    %1592 = vmatpush1.msra.mxu0 0.0
    %1593 = vmatprep.subr.mxu0 0.0
    %1594 = vmatpush1.msra.mxu0 0.0
    %1595 = vmatprep.subr.mxu0 0.0
    %1596 = vmatpush1.msra.mxu0 0.0
    %1597 = vmatprep.subr.mxu0 0.0
    %1598 = vmatpush1.msra.mxu0 0.0
    %1599 = vmatprep.subr.mxu0 0.0
    %1600 = vmatpush1.msra.mxu0 0.0
    %1601 = vmatprep.subr.mxu0 0.0
    %1602 = vmatpush1.msra.mxu0 0.0
    %1603 = vmatprep.subr.mxu0 0.0
    %1604 = vmatpush1.msra.mxu0 0.0
    %1605 = vmatprep.mubr.f32.mxu0 0.0
    %v1606 = vand.u32 %v1500, 4294901760
    %v1607 = vsub.f32 %v1500, %v1606
    %v1608 = vand.u32 %v1607, 4294901760
    %v1609 = vsub.f32 %v1607, %v1608
    %v1610 = vand.u32 %v1609, 4294901760
    %1611 = vmatmul.mubr.f32.gmra.mrb[0].mxu0 %v1610
    %v1612 = vpop.f32.mrb[0].mxu0
    %v1613 = vadd.f32 %v1523, %v1612
    %v1614 = vpop.f32.mrb[0].mxu0
    %1615 = vmatprep.mubr.f32.mxu0 0.0
    %v1616 = vand.u32 %v1501, 4294901760
    %v1617 = vsub.f32 %v1501, %v1616
    %v1618 = vand.u32 %v1617, 4294901760
    %v1619 = vsub.f32 %v1617, %v1618
    %v1620 = vand.u32 %v1619, 4294901760
    %1621 = vmatmul.mubr.f32.gmra.mrb[0].mxu0 %v1620
    %v1622 = vpop.f32.mrb[0].mxu0
    %v1623 = vadd.f32 %v1523, %v1622
    %v1624 = vpop.f32.mrb[0].mxu0
    %1625 = vdwg.mxu0
    %1626 = vmatprep.subr.mxu0 0.0
    %v1627 = vand.u32 %v1502, 4294901760
    %v1628 = vsub.f32 %v1502, %v1627
    %v1629 = vand.u32 %v1628, 4294901760
    %v1630 = vsub.f32 %v1628, %v1629
    %v1631 = vand.u32 %v1630, 4294901760
    %1632 = vmatpush1.msra.mxu0 %v1631
    %1633 = vmatprep.subr.mxu0 0.0
    %v1634 = vand.u32 %v1503, 4294901760
    %v1635 = vsub.f32 %v1503, %v1634
    %v1636 = vand.u32 %v1635, 4294901760
    %v1637 = vsub.f32 %v1635, %v1636
    %v1638 = vand.u32 %v1637, 4294901760
    %1639 = vmatpush1.msra.mxu0 %v1638
    %1640 = vmatprep.subr.mxu0 0.0
    %v1641 = vand.u32 %v1504, 4294901760
    %v1642 = vsub.f32 %v1504, %v1641
    %v1643 = vand.u32 %v1642, 4294901760
    %v1644 = vsub.f32 %v1642, %v1643
    %v1645 = vand.u32 %v1644, 4294901760
    %1646 = vmatpush1.msra.mxu0 %v1645
    %1647 = vmatprep.subr.mxu0 0.0
    %v1648 = vand.u32 %v1505, 4294901760
    %v1649 = vsub.f32 %v1505, %v1648
    %v1650 = vand.u32 %v1649, 4294901760
    %v1651 = vsub.f32 %v1649, %v1650
    %v1652 = vand.u32 %v1651, 4294901760
    %1653 = vmatpush1.msra.mxu0 %v1652
    %1654 = vmatprep.subr.mxu0 0.0
    %v1655 = vand.u32 %v1506, 4294901760
    %v1656 = vsub.f32 %v1506, %v1655
    %v1657 = vand.u32 %v1656, 4294901760
    %v1658 = vsub.f32 %v1656, %v1657
    %v1659 = vand.u32 %v1658, 4294901760
    %1660 = vmatpush1.msra.mxu0 %v1659
    %1661 = vmatprep.subr.mxu0 0.0
    %v1662 = vand.u32 %v1507, 4294901760
    %v1663 = vsub.f32 %v1507, %v1662
    %v1664 = vand.u32 %v1663, 4294901760
    %v1665 = vsub.f32 %v1663, %v1664
    %v1666 = vand.u32 %v1665, 4294901760
    %1667 = vmatpush1.msra.mxu0 %v1666
    %1668 = vmatprep.subr.mxu0 0.0
    %v1669 = vand.u32 %v1508, 4294901760
    %v1670 = vsub.f32 %v1508, %v1669
    %v1671 = vand.u32 %v1670, 4294901760
    %v1672 = vsub.f32 %v1670, %v1671
    %v1673 = vand.u32 %v1672, 4294901760
    %1674 = vmatpush1.msra.mxu0 %v1673
    %1675 = vmatprep.subr.mxu0 0.0
    %v1676 = vand.u32 %v1509, 4294901760
    %v1677 = vsub.f32 %v1509, %v1676
    %v1678 = vand.u32 %v1677, 4294901760
    %v1679 = vsub.f32 %v1677, %v1678
    %v1680 = vand.u32 %v1679, 4294901760
    %1681 = vmatpush1.msra.mxu0 %v1680
    %1682 = vmatprep.subr.mxu0 0.0
    %v1683 = vand.u32 %v1510, 4294901760
    %v1684 = vsub.f32 %v1510, %v1683
    %v1685 = vand.u32 %v1684, 4294901760
    %v1686 = vsub.f32 %v1684, %v1685
    %v1687 = vand.u32 %v1686, 4294901760
    %1688 = vmatpush1.msra.mxu0 %v1687
    %1689 = vmatprep.subr.mxu0 0.0
    %v1690 = vand.u32 %v1511, 4294901760
    %v1691 = vsub.f32 %v1511, %v1690
    %v1692 = vand.u32 %v1691, 4294901760
    %v1693 = vsub.f32 %v1691, %v1692
    %v1694 = vand.u32 %v1693, 4294901760
    %1695 = vmatpush1.msra.mxu0 %v1694
    %1696 = vmatprep.subr.mxu0 0.0
    %v1697 = vand.u32 %v1512, 4294901760
    %v1698 = vsub.f32 %v1512, %v1697
    %v1699 = vand.u32 %v1698, 4294901760
    %v1700 = vsub.f32 %v1698, %v1699
    %v1701 = vand.u32 %v1700, 4294901760
    %1702 = vmatpush1.msra.mxu0 %v1701
    %1703 = vmatprep.subr.mxu0 0.0
    %v1704 = vand.u32 %v1513, 4294901760
    %v1705 = vsub.f32 %v1513, %v1704
    %v1706 = vand.u32 %v1705, 4294901760
    %v1707 = vsub.f32 %v1705, %v1706
    %v1708 = vand.u32 %v1707, 4294901760
    %1709 = vmatpush1.msra.mxu0 %v1708
    %1710 = vmatprep.subr.mxu0 0.0
    %v1711 = vand.u32 %v1514, 4294901760
    %v1712 = vsub.f32 %v1514, %v1711
    %v1713 = vand.u32 %v1712, 4294901760
    %v1714 = vsub.f32 %v1712, %v1713
    %v1715 = vand.u32 %v1714, 4294901760
    %1716 = vmatpush1.msra.mxu0 %v1715
    %1717 = vmatprep.subr.mxu0 0.0
    %v1718 = vand.u32 %v1515, 4294901760
    %v1719 = vsub.f32 %v1515, %v1718
    %v1720 = vand.u32 %v1719, 4294901760
    %v1721 = vsub.f32 %v1719, %v1720
    %v1722 = vand.u32 %v1721, 4294901760
    %1723 = vmatpush1.msra.mxu0 %v1722
    %1724 = vmatprep.subr.mxu0 0.0
    %v1725 = vand.u32 %v1516, 4294901760
    %v1726 = vsub.f32 %v1516, %v1725
    %v1727 = vand.u32 %v1726, 4294901760
    %v1728 = vsub.f32 %v1726, %v1727
    %v1729 = vand.u32 %v1728, 4294901760
    %1730 = vmatpush1.msra.mxu0 %v1729
    %1731 = vmatprep.subr.mxu0 0.0
    %v1732 = vand.u32 %v1517, 4294901760
    %v1733 = vsub.f32 %v1517, %v1732
    %v1734 = vand.u32 %v1733, 4294901760
    %v1735 = vsub.f32 %v1733, %v1734
    %v1736 = vand.u32 %v1735, 4294901760
    %1737 = vmatpush1.msra.mxu0 %v1736
    %1738 = vmatprep.subr.mxu0 0.0
    %1739 = vmatpush1.msra.mxu0 0.0
    %1740 = vmatprep.subr.mxu0 0.0
    %1741 = vmatpush1.msra.mxu0 0.0
    %1742 = vmatprep.subr.mxu0 0.0
    %1743 = vmatpush1.msra.mxu0 0.0
    %1744 = vmatprep.subr.mxu0 0.0
    %1745 = vmatpush1.msra.mxu0 0.0
    %1746 = vmatprep.subr.mxu0 0.0
    %1747 = vmatpush1.msra.mxu0 0.0
    %1748 = vmatprep.subr.mxu0 0.0
    %1749 = vmatpush1.msra.mxu0 0.0
    %1750 = vmatprep.subr.mxu0 0.0
    %1751 = vmatpush1.msra.mxu0 0.0
    %1752 = vmatprep.subr.mxu0 0.0
    %1753 = vmatpush1.msra.mxu0 0.0
    %1754 = vmatprep.subr.mxu0 0.0
    %1755 = vmatpush1.msra.mxu0 0.0
    %1756 = vmatprep.subr.mxu0 0.0
    %1757 = vmatpush1.msra.mxu0 0.0
    %1758 = vmatprep.subr.mxu0 0.0
    %1759 = vmatpush1.msra.mxu0 0.0
    %1760 = vmatprep.subr.mxu0 0.0
    %1761 = vmatpush1.msra.mxu0 0.0
    %1762 = vmatprep.subr.mxu0 0.0
    %1763 = vmatpush1.msra.mxu0 0.0
    %1764 = vmatprep.subr.mxu0 0.0
    %1765 = vmatpush1.msra.mxu0 0.0
    %1766 = vmatprep.subr.mxu0 0.0
    %1767 = vmatpush1.msra.mxu0 0.0
    %1768 = vmatprep.subr.mxu0 0.0
    %1769 = vmatpush1.msra.mxu0 0.0
    %1770 = vmatprep.mubr.f32.mxu0 0.0
    %v1771 = vand.u32 %v1500, 4294901760
    %1772 = vmatmul.mubr.f32.gmra.mrb[0].mxu0 %v1771
    %v1773 = vpop.f32.mrb[0].mxu0
    %v1774 = vadd.f32 %v1613, %v1773
    %v1775 = vpop.f32.mrb[0].mxu0
    %1776 = vmatprep.mubr.f32.mxu0 0.0
    %v1777 = vand.u32 %v1501, 4294901760
    %1778 = vmatmul.mubr.f32.gmra.mrb[0].mxu0 %v1777
    %v1779 = vpop.f32.mrb[0].mxu0
    %v1780 = vadd.f32 %v1623, %v1779
    %v1781 = vpop.f32.mrb[0].mxu0
    %1782 = vdwg.mxu0
    %1783 = vmatprep.subr.mxu0 0.0
    %v1784 = vand.u32 %v1502, 4294901760
    %v1785 = vsub.f32 %v1502, %v1784
    %1786 = vmatpush1.msra.mxu0 %v1785
    %1787 = vmatprep.subr.mxu0 0.0
    %v1788 = vand.u32 %v1503, 4294901760
    %v1789 = vsub.f32 %v1503, %v1788
    %1790 = vmatpush1.msra.mxu0 %v1789
    %1791 = vmatprep.subr.mxu0 0.0
    %v1792 = vand.u32 %v1504, 4294901760
    %v1793 = vsub.f32 %v1504, %v1792
    %1794 = vmatpush1.msra.mxu0 %v1793
    %1795 = vmatprep.subr.mxu0 0.0
    %v1796 = vand.u32 %v1505, 4294901760
    %v1797 = vsub.f32 %v1505, %v1796
    %1798 = vmatpush1.msra.mxu0 %v1797
    %1799 = vmatprep.subr.mxu0 0.0
    %v1800 = vand.u32 %v1506, 4294901760
    %v1801 = vsub.f32 %v1506, %v1800
    %1802 = vmatpush1.msra.mxu0 %v1801
    %1803 = vmatprep.subr.mxu0 0.0
    %v1804 = vand.u32 %v1507, 4294901760
    %v1805 = vsub.f32 %v1507, %v1804
    %1806 = vmatpush1.msra.mxu0 %v1805
    %1807 = vmatprep.subr.mxu0 0.0
    %v1808 = vand.u32 %v1508, 4294901760
    %v1809 = vsub.f32 %v1508, %v1808
    %1810 = vmatpush1.msra.mxu0 %v1809
    %1811 = vmatprep.subr.mxu0 0.0
    %v1812 = vand.u32 %v1509, 4294901760
    %v1813 = vsub.f32 %v1509, %v1812
    %1814 = vmatpush1.msra.mxu0 %v1813
    %1815 = vmatprep.subr.mxu0 0.0
    %v1816 = vand.u32 %v1510, 4294901760
    %v1817 = vsub.f32 %v1510, %v1816
    %1818 = vmatpush1.msra.mxu0 %v1817
    %1819 = vmatprep.subr.mxu0 0.0
    %v1820 = vand.u32 %v1511, 4294901760
    %v1821 = vsub.f32 %v1511, %v1820
    %1822 = vmatpush1.msra.mxu0 %v1821
    %1823 = vmatprep.subr.mxu0 0.0
    %v1824 = vand.u32 %v1512, 4294901760
    %v1825 = vsub.f32 %v1512, %v1824
    %1826 = vmatpush1.msra.mxu0 %v1825
    %1827 = vmatprep.subr.mxu0 0.0
    %v1828 = vand.u32 %v1513, 4294901760
    %v1829 = vsub.f32 %v1513, %v1828
    %1830 = vmatpush1.msra.mxu0 %v1829
    %1831 = vmatprep.subr.mxu0 0.0
    %v1832 = vand.u32 %v1514, 4294901760
    %v1833 = vsub.f32 %v1514, %v1832
    %1834 = vmatpush1.msra.mxu0 %v1833
    %1835 = vmatprep.subr.mxu0 0.0
    %v1836 = vand.u32 %v1515, 4294901760
    %v1837 = vsub.f32 %v1515, %v1836
    %1838 = vmatpush1.msra.mxu0 %v1837
    %1839 = vmatprep.subr.mxu0 0.0
    %v1840 = vand.u32 %v1516, 4294901760
    %v1841 = vsub.f32 %v1516, %v1840
    %1842 = vmatpush1.msra.mxu0 %v1841
    %1843 = vmatprep.subr.mxu0 0.0
    %v1844 = vand.u32 %v1517, 4294901760
    %v1845 = vsub.f32 %v1517, %v1844
    %1846 = vmatpush1.msra.mxu0 %v1845
    %1847 = vmatprep.subr.mxu0 0.0
    %1848 = vmatpush1.msra.mxu0 0.0
    %1849 = vmatprep.subr.mxu0 0.0
    %1850 = vmatpush1.msra.mxu0 0.0
    %1851 = vmatprep.subr.mxu0 0.0
    %1852 = vmatpush1.msra.mxu0 0.0
    %1853 = vmatprep.subr.mxu0 0.0
    %1854 = vmatpush1.msra.mxu0 0.0
    %1855 = vmatprep.subr.mxu0 0.0
    %1856 = vmatpush1.msra.mxu0 0.0
    %1857 = vmatprep.subr.mxu0 0.0
    %1858 = vmatpush1.msra.mxu0 0.0
    %1859 = vmatprep.subr.mxu0 0.0
    %1860 = vmatpush1.msra.mxu0 0.0
    %1861 = vmatprep.subr.mxu0 0.0
    %1862 = vmatpush1.msra.mxu0 0.0
    %1863 = vmatprep.subr.mxu0 0.0
    %1864 = vmatpush1.msra.mxu0 0.0
    %1865 = vmatprep.subr.mxu0 0.0
    %1866 = vmatpush1.msra.mxu0 0.0
    %1867 = vmatprep.subr.mxu0 0.0
    %1868 = vmatpush1.msra.mxu0 0.0
    %1869 = vmatprep.subr.mxu0 0.0
    %1870 = vmatpush1.msra.mxu0 0.0
    %1871 = vmatprep.subr.mxu0 0.0
    %1872 = vmatpush1.msra.mxu0 0.0
    %1873 = vmatprep.subr.mxu0 0.0
    %1874 = vmatpush1.msra.mxu0 0.0
    %1875 = vmatprep.subr.mxu0 0.0
    %1876 = vmatpush1.msra.mxu0 0.0
    %1877 = vmatprep.subr.mxu0 0.0
    %1878 = vmatpush1.msra.mxu0 0.0
    %1879 = vmatprep.mubr.f32.mxu0 0.0
    %v1880 = vand.u32 %v1500, 4294901760
    %v1881 = vsub.f32 %v1500, %v1880
    %1882 = vmatmul.mubr.f32.gmra.mrb[0].mxu0 %v1881
    %v1883 = vpop.f32.mrb[0].mxu0
    %v1884 = vadd.f32 %v1774, %v1883
    %v1885 = vpop.f32.mrb[0].mxu0
    %1886 = vmatprep.mubr.f32.mxu0 0.0
    %v1887 = vand.u32 %v1501, 4294901760
    %v1888 = vsub.f32 %v1501, %v1887
    %1889 = vmatmul.mubr.f32.gmra.mrb[0].mxu0 %v1888
    %v1890 = vpop.f32.mrb[0].mxu0
    %v1891 = vadd.f32 %v1780, %v1890
    %v1892 = vpop.f32.mrb[0].mxu0
    %1893 = vdwg.mxu0
    %1894 = vmatprep.subr.mxu0 0.0
    %v1895 = vand.u32 %v1502, 4294901760
    %1896 = vmatpush1.msra.mxu0 %v1895
    %1897 = vmatprep.subr.mxu0 0.0
    %v1898 = vand.u32 %v1503, 4294901760
    %1899 = vmatpush1.msra.mxu0 %v1898
    %1900 = vmatprep.subr.mxu0 0.0
    %v1901 = vand.u32 %v1504, 4294901760
    %1902 = vmatpush1.msra.mxu0 %v1901
    %1903 = vmatprep.subr.mxu0 0.0
    %v1904 = vand.u32 %v1505, 4294901760
    %1905 = vmatpush1.msra.mxu0 %v1904
    %1906 = vmatprep.subr.mxu0 0.0
    %v1907 = vand.u32 %v1506, 4294901760
    %1908 = vmatpush1.msra.mxu0 %v1907
    %1909 = vmatprep.subr.mxu0 0.0
    %v1910 = vand.u32 %v1507, 4294901760
    %1911 = vmatpush1.msra.mxu0 %v1910
    %1912 = vmatprep.subr.mxu0 0.0
    %v1913 = vand.u32 %v1508, 4294901760
    %1914 = vmatpush1.msra.mxu0 %v1913
    %1915 = vmatprep.subr.mxu0 0.0
    %v1916 = vand.u32 %v1509, 4294901760
    %1917 = vmatpush1.msra.mxu0 %v1916
    %1918 = vmatprep.subr.mxu0 0.0
    %v1919 = vand.u32 %v1510, 4294901760
    %1920 = vmatpush1.msra.mxu0 %v1919
    %1921 = vmatprep.subr.mxu0 0.0
    %v1922 = vand.u32 %v1511, 4294901760
    %1923 = vmatpush1.msra.mxu0 %v1922
    %1924 = vmatprep.subr.mxu0 0.0
    %v1925 = vand.u32 %v1512, 4294901760
    %1926 = vmatpush1.msra.mxu0 %v1925
    %1927 = vmatprep.subr.mxu0 0.0
    %v1928 = vand.u32 %v1513, 4294901760
    %1929 = vmatpush1.msra.mxu0 %v1928
    %1930 = vmatprep.subr.mxu0 0.0
    %v1931 = vand.u32 %v1514, 4294901760
    %1932 = vmatpush1.msra.mxu0 %v1931
    %1933 = vmatprep.subr.mxu0 0.0
    %v1934 = vand.u32 %v1515, 4294901760
    %1935 = vmatpush1.msra.mxu0 %v1934
    %1936 = vmatprep.subr.mxu0 0.0
    %v1937 = vand.u32 %v1516, 4294901760
    %1938 = vmatpush1.msra.mxu0 %v1937
    %1939 = vmatprep.subr.mxu0 0.0
    %v1940 = vand.u32 %v1517, 4294901760
    %1941 = vmatpush1.msra.mxu0 %v1940
    %1942 = vmatprep.subr.mxu0 0.0
    %1943 = vmatpush1.msra.mxu0 0.0
    %1944 = vmatprep.subr.mxu0 0.0
    %1945 = vmatpush1.msra.mxu0 0.0
    %1946 = vmatprep.subr.mxu0 0.0
    %1947 = vmatpush1.msra.mxu0 0.0
    %1948 = vmatprep.subr.mxu0 0.0
    %1949 = vmatpush1.msra.mxu0 0.0
    %1950 = vmatprep.subr.mxu0 0.0
    %1951 = vmatpush1.msra.mxu0 0.0
    %1952 = vmatprep.subr.mxu0 0.0
    %1953 = vmatpush1.msra.mxu0 0.0
    %1954 = vmatprep.subr.mxu0 0.0
    %1955 = vmatpush1.msra.mxu0 0.0
    %1956 = vmatprep.subr.mxu0 0.0
    %1957 = vmatpush1.msra.mxu0 0.0
    %1958 = vmatprep.subr.mxu0 0.0
    %1959 = vmatpush1.msra.mxu0 0.0
    %1960 = vmatprep.subr.mxu0 0.0
    %1961 = vmatpush1.msra.mxu0 0.0
    %1962 = vmatprep.subr.mxu0 0.0
    %1963 = vmatpush1.msra.mxu0 0.0
    %1964 = vmatprep.subr.mxu0 0.0
    %1965 = vmatpush1.msra.mxu0 0.0
    %1966 = vmatprep.subr.mxu0 0.0
    %1967 = vmatpush1.msra.mxu0 0.0
    %1968 = vmatprep.subr.mxu0 0.0
    %1969 = vmatpush1.msra.mxu0 0.0
    %1970 = vmatprep.subr.mxu0 0.0
    %1971 = vmatpush1.msra.mxu0 0.0
    %1972 = vmatprep.subr.mxu0 0.0
    %1973 = vmatpush1.msra.mxu0 0.0
    %1974 = vmatprep.mubr.f32.mxu0 0.0
    %v1975 = vand.u32 %v1500, 4294901760
    %v1976 = vsub.f32 %v1500, %v1975
    %v1977 = vand.u32 %v1976, 4294901760
    %1978 = vmatmul.mubr.f32.gmra.mrb[0].mxu0 %v1977
    %v1979 = vpop.f32.mrb[0].mxu0
    %v1980 = vadd.f32 %v1884, %v1979
    %v1981 = vpop.f32.mrb[0].mxu0
    %1982 = vmatprep.mubr.f32.mxu0 0.0
    %v1983 = vand.u32 %v1501, 4294901760
    %v1984 = vsub.f32 %v1501, %v1983
    %v1985 = vand.u32 %v1984, 4294901760
    %1986 = vmatmul.mubr.f32.gmra.mrb[0].mxu0 %v1985
    %v1987 = vpop.f32.mrb[0].mxu0
    %v1988 = vadd.f32 %v1891, %v1987
    %v1989 = vpop.f32.mrb[0].mxu0
    %1990 = vdwg.mxu0
    %1991 = vmatprep.subr.mxu0 0.0
    %v1992 = vand.u32 %v1502, 4294901760
    %v1993 = vsub.f32 %v1502, %v1992
    %v1994 = vand.u32 %v1993, 4294901760
    %1995 = vmatpush1.msra.mxu0 %v1994
    %1996 = vmatprep.subr.mxu0 0.0
    %v1997 = vand.u32 %v1503, 4294901760
    %v1998 = vsub.f32 %v1503, %v1997
    %v1999 = vand.u32 %v1998, 4294901760
    %2000 = vmatpush1.msra.mxu0 %v1999
    %2001 = vmatprep.subr.mxu0 0.0
    %v2002 = vand.u32 %v1504, 4294901760
    %v2003 = vsub.f32 %v1504, %v2002
    %v2004 = vand.u32 %v2003, 4294901760
    %2005 = vmatpush1.msra.mxu0 %v2004
    %2006 = vmatprep.subr.mxu0 0.0
    %v2007 = vand.u32 %v1505, 4294901760
    %v2008 = vsub.f32 %v1505, %v2007
    %v2009 = vand.u32 %v2008, 4294901760
    %2010 = vmatpush1.msra.mxu0 %v2009
    %2011 = vmatprep.subr.mxu0 0.0
    %v2012 = vand.u32 %v1506, 4294901760
    %v2013 = vsub.f32 %v1506, %v2012
    %v2014 = vand.u32 %v2013, 4294901760
    %2015 = vmatpush1.msra.mxu0 %v2014
    %2016 = vmatprep.subr.mxu0 0.0
    %v2017 = vand.u32 %v1507, 4294901760
    %v2018 = vsub.f32 %v1507, %v2017
    %v2019 = vand.u32 %v2018, 4294901760
    %2020 = vmatpush1.msra.mxu0 %v2019
    %2021 = vmatprep.subr.mxu0 0.0
    %v2022 = vand.u32 %v1508, 4294901760
    %v2023 = vsub.f32 %v1508, %v2022
    %v2024 = vand.u32 %v2023, 4294901760
    %2025 = vmatpush1.msra.mxu0 %v2024
    %2026 = vmatprep.subr.mxu0 0.0
    %v2027 = vand.u32 %v1509, 4294901760
    %v2028 = vsub.f32 %v1509, %v2027
    %v2029 = vand.u32 %v2028, 4294901760
    %2030 = vmatpush1.msra.mxu0 %v2029
    %2031 = vmatprep.subr.mxu0 0.0
    %v2032 = vand.u32 %v1510, 4294901760
    %v2033 = vsub.f32 %v1510, %v2032
    %v2034 = vand.u32 %v2033, 4294901760
    %2035 = vmatpush1.msra.mxu0 %v2034
    %2036 = vmatprep.subr.mxu0 0.0
    %v2037 = vand.u32 %v1511, 4294901760
    %v2038 = vsub.f32 %v1511, %v2037
    %v2039 = vand.u32 %v2038, 4294901760
    %2040 = vmatpush1.msra.mxu0 %v2039
    %2041 = vmatprep.subr.mxu0 0.0
    %v2042 = vand.u32 %v1512, 4294901760
    %v2043 = vsub.f32 %v1512, %v2042
    %v2044 = vand.u32 %v2043, 4294901760
    %2045 = vmatpush1.msra.mxu0 %v2044
    %2046 = vmatprep.subr.mxu0 0.0
    %v2047 = vand.u32 %v1513, 4294901760
    %v2048 = vsub.f32 %v1513, %v2047
    %v2049 = vand.u32 %v2048, 4294901760
    %2050 = vmatpush1.msra.mxu0 %v2049
    %2051 = vmatprep.subr.mxu0 0.0
    %v2052 = vand.u32 %v1514, 4294901760
    %v2053 = vsub.f32 %v1514, %v2052
    %v2054 = vand.u32 %v2053, 4294901760
    %2055 = vmatpush1.msra.mxu0 %v2054
    %2056 = vmatprep.subr.mxu0 0.0
    %v2057 = vand.u32 %v1515, 4294901760
    %v2058 = vsub.f32 %v1515, %v2057
    %v2059 = vand.u32 %v2058, 4294901760
    %2060 = vmatpush1.msra.mxu0 %v2059
    %2061 = vmatprep.subr.mxu0 0.0
    %v2062 = vand.u32 %v1516, 4294901760
    %v2063 = vsub.f32 %v1516, %v2062
    %v2064 = vand.u32 %v2063, 4294901760
    %2065 = vmatpush1.msra.mxu0 %v2064
    %2066 = vmatprep.subr.mxu0 0.0
    %v2067 = vand.u32 %v1517, 4294901760
    %v2068 = vsub.f32 %v1517, %v2067
    %v2069 = vand.u32 %v2068, 4294901760
    %2070 = vmatpush1.msra.mxu0 %v2069
    %2071 = vmatprep.subr.mxu0 0.0
    %2072 = vmatpush1.msra.mxu0 0.0
    %2073 = vmatprep.subr.mxu0 0.0
    %2074 = vmatpush1.msra.mxu0 0.0
    %2075 = vmatprep.subr.mxu0 0.0
    %2076 = vmatpush1.msra.mxu0 0.0
    %2077 = vmatprep.subr.mxu0 0.0
    %2078 = vmatpush1.msra.mxu0 0.0
    %2079 = vmatprep.subr.mxu0 0.0
    %2080 = vmatpush1.msra.mxu0 0.0
    %2081 = vmatprep.subr.mxu0 0.0
    %2082 = vmatpush1.msra.mxu0 0.0
    %2083 = vmatprep.subr.mxu0 0.0
    %2084 = vmatpush1.msra.mxu0 0.0
    %2085 = vmatprep.subr.mxu0 0.0
    %2086 = vmatpush1.msra.mxu0 0.0
    %2087 = vmatprep.subr.mxu0 0.0
    %2088 = vmatpush1.msra.mxu0 0.0
    %2089 = vmatprep.subr.mxu0 0.0
    %2090 = vmatpush1.msra.mxu0 0.0
    %2091 = vmatprep.subr.mxu0 0.0
    %2092 = vmatpush1.msra.mxu0 0.0
    %2093 = vmatprep.subr.mxu0 0.0
    %2094 = vmatpush1.msra.mxu0 0.0
    %2095 = vmatprep.subr.mxu0 0.0
    %2096 = vmatpush1.msra.mxu0 0.0
    %2097 = vmatprep.subr.mxu0 0.0
    %2098 = vmatpush1.msra.mxu0 0.0
    %2099 = vmatprep.subr.mxu0 0.0
    %2100 = vmatpush1.msra.mxu0 0.0
    %2101 = vmatprep.subr.mxu0 0.0
    %2102 = vmatpush1.msra.mxu0 0.0
    %2103 = vmatprep.mubr.f32.mxu0 0.0
    %v2104 = vand.u32 %v1500, 4294901760
    %2105 = vmatmul.mubr.f32.gmra.mrb[0].mxu0 %v2104
    %v2106 = vpop.f32.mrb[0].mxu0
    %v2107 = vadd.f32 %v1980, %v2106
    %v2108 = vpop.f32.mrb[0].mxu0
    %2109 = vmatprep.mubr.f32.mxu0 0.0
    %v2110 = vand.u32 %v1501, 4294901760
    %2111 = vmatmul.mubr.f32.gmra.mrb[0].mxu0 %v2110
    %v2112 = vpop.f32.mrb[0].mxu0
    %v2113 = vadd.f32 %v1988, %v2112
    %v2114 = vpop.f32.mrb[0].mxu0
    %2115 = vdwg.mxu0
    %2116 = vmatprep.subr.mxu0 0.0
    %v2117 = vand.u32 %v1502, 4294901760
    %2118 = vmatpush1.msra.mxu0 %v2117
    %2119 = vmatprep.subr.mxu0 0.0
    %v2120 = vand.u32 %v1503, 4294901760
    %2121 = vmatpush1.msra.mxu0 %v2120
    %2122 = vmatprep.subr.mxu0 0.0
    %v2123 = vand.u32 %v1504, 4294901760
    %2124 = vmatpush1.msra.mxu0 %v2123
    %2125 = vmatprep.subr.mxu0 0.0
    %v2126 = vand.u32 %v1505, 4294901760
    %2127 = vmatpush1.msra.mxu0 %v2126
    %2128 = vmatprep.subr.mxu0 0.0
    %v2129 = vand.u32 %v1506, 4294901760
    %2130 = vmatpush1.msra.mxu0 %v2129
    %2131 = vmatprep.subr.mxu0 0.0
    %v2132 = vand.u32 %v1507, 4294901760
    %2133 = vmatpush1.msra.mxu0 %v2132
    %2134 = vmatprep.subr.mxu0 0.0
    %v2135 = vand.u32 %v1508, 4294901760
    %2136 = vmatpush1.msra.mxu0 %v2135
    %2137 = vmatprep.subr.mxu0 0.0
    %v2138 = vand.u32 %v1509, 4294901760
    %2139 = vmatpush1.msra.mxu0 %v2138
    %2140 = vmatprep.subr.mxu0 0.0
    %v2141 = vand.u32 %v1510, 4294901760
    %2142 = vmatpush1.msra.mxu0 %v2141
    %2143 = vmatprep.subr.mxu0 0.0
    %v2144 = vand.u32 %v1511, 4294901760
    %2145 = vmatpush1.msra.mxu0 %v2144
    %2146 = vmatprep.subr.mxu0 0.0
    %v2147 = vand.u32 %v1512, 4294901760
    %2148 = vmatpush1.msra.mxu0 %v2147
    %2149 = vmatprep.subr.mxu0 0.0
    %v2150 = vand.u32 %v1513, 4294901760
    %2151 = vmatpush1.msra.mxu0 %v2150
    %2152 = vmatprep.subr.mxu0 0.0
    %v2153 = vand.u32 %v1514, 4294901760
    %2154 = vmatpush1.msra.mxu0 %v2153
    %2155 = vmatprep.subr.mxu0 0.0
    %v2156 = vand.u32 %v1515, 4294901760
    %2157 = vmatpush1.msra.mxu0 %v2156
    %2158 = vmatprep.subr.mxu0 0.0
    %v2159 = vand.u32 %v1516, 4294901760
    %2160 = vmatpush1.msra.mxu0 %v2159
    %2161 = vmatprep.subr.mxu0 0.0
    %v2162 = vand.u32 %v1517, 4294901760
    %2163 = vmatpush1.msra.mxu0 %v2162
    %2164 = vmatprep.subr.mxu0 0.0
    %2165 = vmatpush1.msra.mxu0 0.0
    %2166 = vmatprep.subr.mxu0 0.0
    %2167 = vmatpush1.msra.mxu0 0.0
    %2168 = vmatprep.subr.mxu0 0.0
    %2169 = vmatpush1.msra.mxu0 0.0
    %2170 = vmatprep.subr.mxu0 0.0
    %2171 = vmatpush1.msra.mxu0 0.0
    %2172 = vmatprep.subr.mxu0 0.0
    %2173 = vmatpush1.msra.mxu0 0.0
    %2174 = vmatprep.subr.mxu0 0.0
    %2175 = vmatpush1.msra.mxu0 0.0
    %2176 = vmatprep.subr.mxu0 0.0
    %2177 = vmatpush1.msra.mxu0 0.0
    %2178 = vmatprep.subr.mxu0 0.0
    %2179 = vmatpush1.msra.mxu0 0.0
    %2180 = vmatprep.subr.mxu0 0.0
    %2181 = vmatpush1.msra.mxu0 0.0
    %2182 = vmatprep.subr.mxu0 0.0
    %2183 = vmatpush1.msra.mxu0 0.0
    %2184 = vmatprep.subr.mxu0 0.0
    %2185 = vmatpush1.msra.mxu0 0.0
    %2186 = vmatprep.subr.mxu0 0.0
    %2187 = vmatpush1.msra.mxu0 0.0
    %2188 = vmatprep.subr.mxu0 0.0
    %2189 = vmatpush1.msra.mxu0 0.0
    %2190 = vmatprep.subr.mxu0 0.0
    %2191 = vmatpush1.msra.mxu0 0.0
    %2192 = vmatprep.subr.mxu0 0.0
    %2193 = vmatpush1.msra.mxu0 0.0
    %2194 = vmatprep.subr.mxu0 0.0
    %2195 = vmatpush1.msra.mxu0 0.0
    %2196 = vmatprep.mubr.f32.mxu0 0.0
    %v2197 = vand.u32 %v1500, 4294901760
    %2198 = vmatmul.mubr.f32.gmra.mrb[0].mxu0 %v2197
    %v2199 = vpop.f32.mrb[0].mxu0
    %v2200 = vadd.f32 %v2107, %v2199
    %v2201 = vpop.f32.mrb[0].mxu0
    %2202 = vmatprep.mubr.f32.mxu0 0.0
    %v2203 = vand.u32 %v1501, 4294901760
    %2204 = vmatmul.mubr.f32.gmra.mrb[0].mxu0 %v2203
    %v2205 = vpop.f32.mrb[0].mxu0
    %v2206 = vadd.f32 %v2113, %v2205
    %v2207 = vpop.f32.mrb[0].mxu0
    %2208 = vdwg.mxu0
    %v2209 = vrot.slane %v2200, 4
    %v2210 = vadd.f32 %v2200, %v2209
    %v2211 = vrot.slane %v2210, 2
    %v2212 = vadd.f32 %v2210, %v2211
    %v2213 = vrot.slane %v2212, 1
    %v2214 = vadd.f32 %v2212, %v2213
    %v2215 = vrot.slane %v2206, 4
    %v2216 = vadd.f32 %v2206, %v2215
    %v2217 = vrot.slane %v2216, 2
    %v2218 = vadd.f32 %v2216, %v2217
    %v2219 = vrot.slane %v2218, 1
    %v2220 = vadd.f32 %v2218, %v2219
    %v2221 = vmul.f32 %v2214, 0.125
    %v2222 = vmul.f32 %v2220, 0.125
    %vm2225 = vcmask 1041409
    %v2226 = vsel %vm2225, %v2222, %v2221
    %2228 = vst [vmem:[#allocation10] sm:$0x3] %v2226
    // Predicated region
    $region46: #{tpu_custom_call.1} parent=1 // pred_check
      _
    $region47: #{tpu_custom_call.1} parent=1 // pred_check_branch
      %2230 = sbr.rel (0) target = $region49
    $region48: #{tpu_custom_call.1} parent=1 // pred_region
      %s2232 = ssub.s32 32, 32
      %2233 = vsyncadd [#allocation4], %s2232
      %s2235 = sshll.u32 [#allocation10], 4
      %s2236 = int_to_ptr.vmem [resolvable:$true] %s2235
      %2238 = dma.vmem_to_hbm [thread:$0]  %s2236, 32, %s7, [#allocation4]
    $region49: #{tpu_custom_call.1} parent=1 // pred_fallthru
      _
    // Predicated region
    $region50: #{tpu_custom_call.1} parent=1 // pred_check
      _
    $region51: #{tpu_custom_call.1} parent=1 // pred_check_branch
      %2240 = sbr.rel (0) target = $region53
    $region52: #{tpu_custom_call.1} parent=1 // pred_region
      %2241 = dma.done [#allocation4], 32
    $region53: #{tpu_custom_call.1} parent=1 // pred_fallthru
      _
    %2242 = vsyncpa [#allocation3], 1
    %2243 = vsyncpa [#allocation6], 1
    %2244 = vsyncpa [#allocation9], 1
    %2245 = vsyncpa [#allocation4], 1

</llo_original>
